<compile_context>
chip_gen: v7x
topology: tpu7x:2x2x1
jax: 0.10.0
libtpu: 0.0.40
codegen_flags: <defaults>
</compile_context>

<pallas_src>
import functools
import math

import jax
import jax.numpy as jnp
from jax.experimental import pallas as pl
from jax.experimental.pallas import tpu as pltpu


def _round_up(x, m):
    return ((x + m - 1) // m) * m


def _logreg_kernel(x_ref, w_ref, b_ref, o_ref, acc_ref, *, f_total, tk):
    # x_ref:   (TM, TK) VMEM tile of examples (native dtype, upcast here)
    # w_ref:   (1, TK)  VMEM lane-dense weight chunk (f32, zero-padded past F)
    # b_ref:   (1, 1)   SMEM scalar bias
    # o_ref:   (1, TM)  lane-dense output row block
    # acc_ref: (1, TM)  f32 lane-dense accumulator (scratch)
    k = pl.program_id(1)

    @pl.when(k == 0)
    def _():
        acc_ref[...] = jnp.zeros_like(acc_ref)

    x = x_ref[...].astype(jnp.float32)   # upcast-on-load rides the VPU slot
    w = w_ref[...].astype(jnp.float32)

    if f_total % tk != 0:
        # Last K chunk is partial: zero x columns past F so padded garbage
        # (possibly NaN bits) never reaches the accumulation.  Weight is
        # already zero-padded in the wrapper, so products there are 0 * 0.
        col = jax.lax.broadcasted_iota(jnp.int32, x.shape, 1) + k * tk
        x = jnp.where(col < f_total, x, 0.0)

    # (1, TK) . (TM, TK)^T -> (1, TM): logits land lane-dense, no relayout.
    # MXU is ~20x faster than the HBM stream here, so M=1 utilization is fine.
    acc_ref[...] += jax.lax.dot_general(
        w, x, (((1,), (1,)), ((), ())),
        preferred_element_type=jnp.float32,
        precision=jax.lax.Precision.HIGHEST)

    @pl.when(k == pl.num_programs(1) - 1)
    def _():
        o_ref[...] = jax.nn.sigmoid(acc_ref[...] + b_ref[0, 0])


def simple_logreg_forward(x, weight, bias):
    """sigmoid(x @ weight.T + bias) == SimpleLogreg.forward.

    x:      (B, F) float-ish (kept in native dtype; upcast in-kernel)
    weight: (1, F)           (PyTorch nn.Linear(num_features, 1).weight layout)
    bias:   (1,)
    returns (B, 1) float32
    """
    B, F = x.shape
    itemsize = x.dtype.itemsize

    # ---- Generation-aware budgets (derived from VMEM capacity). ----
    try:
        vmem_cap = int(pltpu.get_tpu_info().vmem_capacity_bytes)
    except Exception:
        vmem_cap = 64 << 20                       # conservative: v7x-sized VMEM
    small_vmem = vmem_cap <= (64 << 20)           # v7x: 2 TCs, 64 MiB VMEM each
    x_buf_target = (2 << 20) if small_vmem else (4 << 20)   # per x input buffer
    vmem_cap_limit = int(0.75 * vmem_cap)

    f_pad = _round_up(F, 128)                     # lane padding of the x tile
    b_pad = _round_up(B, 128)                     # keep output blocks 128-lane dense

    # ---- Tile selection (byte-budgeted). ----
    if itemsize * f_pad * 128 <= x_buf_target:
        # Preferred: single K step (tk == F), batch tile sized to the budget.
        tk = F
        tm = (x_buf_target // (itemsize * f_pad)) // 128 * 128
        tm = max(128, min(tm, b_pad))
    else:
        # Very wide feature dim: also tile the reduction (second grid axis).
        tm = min(512, b_pad)
        tk = (x_buf_target // (itemsize * tm)) // 128 * 128
        tk = max(128, min(tk, f_pad))

    num_m = pl.cdiv(b_pad, tm)
    # v7x: make sure the ("parallel", ...) batch axis has >=2 tiles to split
    # across the 2 TensorCores (also halves per-core VMEM pressure).
    if small_vmem and num_m < 2 and b_pad >= 256:
        tm = _round_up(pl.cdiv(b_pad, 2), 128)
        num_m = pl.cdiv(b_pad, tm)
    num_k = pl.cdiv(F, tk)

    # ---- Parameters (tiny): lane-dense f32 weight row, zero-padded to num_k*tk. ----
    k_pad = num_k * tk
    w_row = weight.reshape(1, F).astype(jnp.float32)
    if k_pad != F:
        w_row = jnp.pad(w_row, ((0, 0), (0, k_pad - F)))
    b2 = bias.reshape(1, 1).astype(jnp.float32)   # scalar, lives in SMEM

    # ---- VMEM limit: account for (8,128) layout padding of every buffer. ----
    tk_lanes = _round_up(tk, 128)
    vmem_need = (
        2 * tm * tk_lanes * itemsize   # double-buffered x tiles
        + 2 * 8 * tk_lanes * 4         # double-buffered (1, tk) weight rows
        + 2 * 8 * tm * 4               # double-buffered (1, tm) output blocks
        + 8 * tm * 4                   # (1, tm) f32 accumulator scratch
        + (4 << 20)                    # compiler scratch / headroom
    )
    vmem_limit = int(min(max(vmem_need, 32 << 20), vmem_cap_limit))

    kernel = functools.partial(_logreg_kernel, f_total=F, tk=tk)

    out_row = pl.pallas_call(
        kernel,
        out_shape=jax.ShapeDtypeStruct((1, num_m * tm), jnp.float32),
        grid=(num_m, num_k),
        in_specs=[
            pl.BlockSpec((tm, tk), lambda i, k: (i, k)),                 # x tile
            pl.BlockSpec((1, tk), lambda i, k: (0, k)),                  # weight chunk
            pl.BlockSpec((1, 1), lambda i, k: (0, 0),
                         memory_space=pltpu.MemorySpace.SMEM),           # bias scalar
        ],
        out_specs=pl.BlockSpec((1, tm), lambda i, k: (0, i)),            # lane-dense row
        scratch_shapes=[pltpu.VMEM((1, tm), jnp.float32)],               # logit accumulator
        compiler_params=pltpu.CompilerParams(
            dimension_semantics=("parallel", "arbitrary"),
            vmem_limit_bytes=vmem_limit,
        ),
        cost_estimate=pl.CostEstimate(
            flops=2 * B * F,
            transcendentals=B,
            bytes_accessed=itemsize * B * F + 4 * (F + B + 1),
        ),
    )(x, w_row, b2)

    # Padded batch rows (past B) hold garbage-derived values; slice them off.
    return out_row.reshape(-1)[:B].reshape(B, 1)


if __name__ == "__main__":
    # 1024 examples, 32 features (num_features=32), deterministic init.
    batch, num_features = 1024, 32

    key = jax.random.PRNGKey(0)
    kx, kw, kb = jax.random.split(key, 3)

    x = jax.random.normal(kx, (batch, num_features), dtype=jnp.float32)

    # Parameter init mimicking nn.Linear(num_features, 1):
    # U(-1/sqrt(fan_in), 1/sqrt(fan_in)) for both weight and bias.
    bound = 1.0 / math.sqrt(num_features)
    weight = jax.random.uniform(
        kw, (1, num_features), minval=-bound, maxval=bound, dtype=jnp.float32
    )
    bias = jax.random.uniform(
        kb, (1,), minval=-bound, maxval=bound, dtype=jnp.float32
    )

    out = jax.block_until_ready(simple_logreg_forward(x, weight, bias))

    # Plain-JAX reference of the same math (elementwise f32 multiply + sum).
    ref = jax.nn.sigmoid(jnp.sum(x * weight, axis=-1, keepdims=True) + bias)
    assert out.shape == (batch, 1)
    assert jnp.allclose(out, ref, atol=1e-4, rtol=1e-4)

    print("KERNEL_OK")
</pallas_src>

<mosaic_0001>
module attributes {stable_mosaic.version = 11 : i64} {
  func.func @_logreg_kernel(%arg0: i32, %arg1: i32, %arg2: memref<512x32xf32, #tpu.memory_space<vmem>>, %arg3: memref<1x32xf32, #tpu.memory_space<vmem>>, %arg4: memref<1x1xf32, #tpu.memory_space<smem>>, %arg5: memref<1x512xf32, #tpu.memory_space<vmem>>, %arg6: memref<1x512xf32, #tpu.memory_space<vmem>>) attributes {dimension_semantics = [#tpu.dimension_semantics<parallel>, #tpu.dimension_semantics<arbitrary>], iteration_bounds = array<i64: 2, 1>, scalar_prefetch = 0 : i64, scratch_operands = 1 : i64, tpu.core_type = #tpu.core_type<tc>, window_params = [{transform_indices = @transform_0, window_bounds = array<i64: 512, 32>}, {transform_indices = @transform_1, window_bounds = array<i64: 1, 32>}, {transform_indices = @transform_2, window_bounds = array<i64: 1, 1>}, {transform_indices = @transform_3, window_bounds = array<i64: 1, 512>}]} {
    %c0_i32 = arith.constant 0 : i32
    %0 = arith.cmpi eq, %arg1, %c0_i32 : i32
    %1 = arith.extui %0 : i1 to i32
    %c0_i32_0 = arith.constant 0 : i32
    %2 = arith.cmpi ne, %1, %c0_i32_0 : i32
    scf.if %2 {
      %cst_10 = arith.constant 0.000000e+00 : f32
      %12 = vector.broadcast %cst_10 : f32 to vector<1x512xf32>
      %c0_11 = arith.constant 0 : index
      %c0_12 = arith.constant 0 : index
      %13 = vector.load %arg6[%c0_11, %c0_12] : memref<1x512xf32, #tpu.memory_space<vmem>>, vector<1x512xf32>
      tpu.vector_store %arg6[%c0_11, %c0_12], %12 {strides = array<i32>} : memref<1x512xf32, #tpu.memory_space<vmem>>, vector<1x512xf32>,
    } else {
    }
    %c0 = arith.constant 0 : index
    %c0_1 = arith.constant 0 : index
    %3 = vector.load %arg2[%c0, %c0_1] : memref<512x32xf32, #tpu.memory_space<vmem>>, vector<512x32xf32>
    %c0_2 = arith.constant 0 : index
    %c0_3 = arith.constant 0 : index
    %4 = vector.load %arg3[%c0_2, %c0_3] : memref<1x32xf32, #tpu.memory_space<vmem>>, vector<1x32xf32>
    %c0_4 = arith.constant 0 : index
    %c0_5 = arith.constant 0 : index
    %5 = vector.load %arg6[%c0_4, %c0_5] : memref<1x512xf32, #tpu.memory_space<vmem>>, vector<1x512xf32>
    %cst = arith.constant dense<0.000000e+00> : vector<1x512xf32>
    %6 = tpu.matmul %4, %3, %cst {dimension_numbers = #tpu.dot_dimension_numbers<[1], [1], [0], [0], [0, 0, 1, 0], [], []>, precision = #tpu.contract_precision<fp32>} : vector<1x32xf32>, vector<512x32xf32>, vector<1x512xf32> -> vector<1x512xf32>
    %7 = arith.addf %5, %6 : vector<1x512xf32>
    %c0_6 = arith.constant 0 : index
    %c0_7 = arith.constant 0 : index
    %8 = vector.load %arg6[%c0_6, %c0_7] : memref<1x512xf32, #tpu.memory_space<vmem>>, vector<1x512xf32>
    tpu.vector_store %arg6[%c0_6, %c0_7], %7 {strides = array<i32>} : memref<1x512xf32, #tpu.memory_space<vmem>>, vector<1x512xf32>,
    %c0_i32_8 = arith.constant 0 : i32
    %9 = arith.cmpi eq, %arg1, %c0_i32_8 : i32
    %10 = arith.extui %9 : i1 to i32
    %c0_i32_9 = arith.constant 0 : i32
    %11 = arith.cmpi ne, %10, %c0_i32_9 : i32
    scf.if %11 {
      %c0_10 = arith.constant 0 : index
      %c0_11 = arith.constant 0 : index
      %12 = vector.load %arg6[%c0_10, %c0_11] : memref<1x512xf32, #tpu.memory_space<vmem>>, vector<1x512xf32>
      %c0_12 = arith.constant 0 : index
      %c0_13 = arith.constant 0 : index
      %13 = memref.load %arg4[%c0_12, %c0_13] : memref<1x1xf32, #tpu.memory_space<smem>>
      %14 = vector.broadcast %13 : f32 to vector<1x512xf32>
      %15 = arith.addf %12, %14 : vector<1x512xf32>
      %16 = arith.negf %15 : vector<1x512xf32>
      %17 = math.exp %16 : vector<1x512xf32>
      %cst_14 = arith.constant 1.000000e+00 : f32
      %18 = vector.broadcast %cst_14 : f32 to vector<1x512xf32>
      %19 = arith.addf %18, %17 : vector<1x512xf32>
      %20 = arith.divf %18, %19 : vector<1x512xf32>
      %c0_15 = arith.constant 0 : index
      %c0_16 = arith.constant 0 : index
      %21 = vector.load %arg5[%c0_15, %c0_16] : memref<1x512xf32, #tpu.memory_space<vmem>>, vector<1x512xf32>
      tpu.vector_store %arg5[%c0_15, %c0_16], %20 {strides = array<i32>} : memref<1x512xf32, #tpu.memory_space<vmem>>, vector<1x512xf32>,
    } else {
    }
    return
  }
  func.func @transform_0(%arg0: i32, %arg1: i32) -> (i32, i32) {
    %c0_i32 = arith.constant 0 : i32
    return %arg0, %arg1 : i32, i32
  }
  func.func @transform_1(%arg0: i32, %arg1: i32) -> (i32, i32) {
    %c0_i32 = arith.constant 0 : i32
    %c0_i32_0 = arith.constant 0 : i32
    return %c0_i32, %arg1 : i32, i32
  }
  func.func @transform_2(%arg0: i32, %arg1: i32) -> (i32, i32) {
    %c0_i32 = arith.constant 0 : i32
    %c0_i32_0 = arith.constant 0 : i32
    %c0_i32_1 = arith.constant 0 : i32
    return %c0_i32, %c0_i32_0 : i32, i32
  }
  func.func @transform_3(%arg0: i32, %arg1: i32) -> (i32, i32) {
    %c0_i32 = arith.constant 0 : i32
    %c0_i32_0 = arith.constant 0 : i32
    return %c0_i32, %arg0 : i32, i32
  }
}

</mosaic_0001>

<llo_original>
// kernel: tpu_custom_call.1
$region0: #{tpu_custom_call.1}
  #allocation0 [shape = 'u32[]', space=smem, size = 0x4, offset = 0x4, fixed_abs, tag = 'smem constant byte address 0x4 - core index']
  #allocation1 [shape = 'u32[144,128]{1,0:T(1,128)}', space=vmem, size = 0x12000, scoped, tag = 'internal scratch']
  #allocation2 [shape = 'f32[1,512]{1,0:T(1,128)}', space=vmem, size = 0x800, scoped, tag = 'scratch operand']
  #allocation3 [shape = 'f32[1,1]{1,0:T(1,128)S(6)}', space=smem, size = 0x200, scoped, tag = 'scoped memory for tpu_custom_call.1']
  %s0 = inlined_call_operand.vmem [shape: f32[1024,32], index: 0, kind: input, shape index: {}]
  %s1 = inlined_call_operand.vmem [shape: f32[1,32], index: 1, kind: input, shape index: {}]
  %s2 = inlined_call_operand.<no memory space> [shape: f32[1,1], index: 2, kind: input, shape index: {}]
  %s3 = inlined_call_operand.hbm [shape: f32[1,1024], index: 3, kind: output, shape index: {}]
  %s4 = sld [smem:[#allocation0]]
  $region53: #{tpu_custom_call.1} parent=0
    _
  %s6 = ssub.s32 1, %s4
  %s7 = scalar_select 0, %s6, %s4
  %8 = sst [smem:[#allocation3]] %s2
  $region1: #{tpu_custom_call.1} parent=0
    #allocation4 [shape = 'u8[4096]{0}', space=vmem, size = 0x1000, scoped, tag = 'output window, operand 0']
    #allocation5 [shape = 's32[2]{0}', space=sflag, size = 0x8, scoped, tag = 'scoped memory for tpu_custom_call.1']
    %9 = vsyncpa [#allocation5], 0
    %s10 = scalar_lea.sflag [#allocation5], 1
    %11 = vsyncpa %s10, 0
    loop: start=0, step=1, limit=4
    $region2: #{tpu_custom_call.1} parent=1 // loop_pre_header
      _
    $region3: #{tpu_custom_call.1} parent=1 // loop_header
      %s13 = sphi 0, %s17
      %p14 = scmp.ge.s32.totalorder %s13, 4
      %s20 = sphi 0, %s32
      %s21 = sphi 0, %s28
      %s22 = sphi 0, %s20
      %s23 = sphi 0, %s21
      %s24 = sphi 0, %s22
      %s25 = sphi 0, %s23
      %s37 = sphi 0, %s39
      %s40 = sphi 0, %s37
      %s41 = sphi 0, %s40
      %s57 = sphi 0, %s41
      %s63 = sphi 0, %s65
      %s66 = sphi 0, %s63
      %s67 = sphi 0, %s66
      %s83 = sphi 0, %s67
      %s87 = sphi 0, %s87
      %s89 = sphi 0, %s87
      %s90 = sphi 0, %s89
      %s104 = sphi 0, %s90
      %s110 = sphi 0, %s112
      %s113 = sphi 0, %s110
      %s114 = sphi 0, %s113
      %s130 = sphi 0, %s114
    $region4: #{tpu_custom_call.1} parent=1 // loop_header_branch
      %16 = sbr.rel (%p14) target = $region8
    $region5: #{tpu_custom_call.1} parent=1 // loop_body
      %s18 = ssub.s32 %s13, 1
      %s19 = ssub.s32 %s13, 2
      %s26 = sadd.s32 1, %s21
      %p27 = scmp.ge.s32.totalorder %s26, 1
      %s28 = scalar_select %p27, 0, %s26
      %s29 = sadd.s32 1, %s20
      %s30 = scalar_select %p27, %s29, %s20
      %p31 = scmp.ge.s32.totalorder %s30, 2
      %s32 = scalar_select %p31, 0, %s30
      %s33 = ssub.s32 %s20, %s32
      %s34 = ssub.s32 %s21, %s28
      %s35 = sor.u32 %s33, %s34
      %p36 = scmp.eq.s32.totalorder %s35, 0
      %s38 = sadd.s32 %s37, 1
      %s39 = scalar_select %p36, %s37, %s38
      %p42 = pneg %p36
      %p43 = scmp.eq.s32.totalorder %s13, 1
      %p44 = por %p42, %p43
      %p45 = scmp.ne.s32.totalorder %s37, %s40
      %p46 = scmp.eq.s32.totalorder %s13, 0
      %p47 = por %p45, %p46
      %p48 = scmp.ne.s32.totalorder %s37, %s40
      %p49 = scmp.eq.s32.totalorder %s18, 1
      %p50 = por %p48, %p49
      %p51 = scmp.ne.s32.totalorder %s40, %s41
      %p52 = scmp.eq.s32.totalorder %s18, 0
      %p53 = por %p51, %p52
      %p54 = scmp.ne.s32.totalorder %s40, %s41
      %p55 = scmp.eq.s32.totalorder %s19, 1
      %p56 = por %p54, %p55
      %p58 = scmp.ne.s32.totalorder %s41, %s57
      %p59 = scmp.eq.s32.totalorder %s19, 0
      %p60 = por %p58, %p59
      %s61 = ssub.s32 %s21, %s28
      %p62 = scmp.eq.s32.totalorder %s61, 0
      %s64 = sadd.s32 %s63, 1
      %s65 = scalar_select %p62, %s63, %s64
      %p68 = pneg %p62
      %p69 = scmp.eq.s32.totalorder %s13, 1
      %p70 = por %p68, %p69
      %p71 = scmp.ne.s32.totalorder %s63, %s66
      %p72 = scmp.eq.s32.totalorder %s13, 0
      %p73 = por %p71, %p72
      %p74 = scmp.ne.s32.totalorder %s63, %s66
      %p75 = scmp.eq.s32.totalorder %s18, 1
      %p76 = por %p74, %p75
      %p77 = scmp.ne.s32.totalorder %s66, %s67
      %p78 = scmp.eq.s32.totalorder %s18, 0
      %p79 = por %p77, %p78
      %p80 = scmp.ne.s32.totalorder %s66, %s67
      %p81 = scmp.eq.s32.totalorder %s19, 1
      %p82 = por %p80, %p81
      %p84 = scmp.ne.s32.totalorder %s67, %s83
      %p85 = scmp.eq.s32.totalorder %s19, 0
      %p86 = por %p84, %p85
      %s88 = sadd.s32 %s87, 1
      %p91 = scmp.eq.s32.totalorder %s13, 1
      %p92 = scmp.ne.s32.totalorder %s87, %s89
      %p93 = scmp.eq.s32.totalorder %s13, 0
      %p94 = por %p92, %p93
      %p95 = scmp.ne.s32.totalorder %s87, %s89
      %p96 = scmp.eq.s32.totalorder %s18, 1
      %p97 = por %p95, %p96
      %p98 = scmp.ne.s32.totalorder %s89, %s90
      %p99 = scmp.eq.s32.totalorder %s18, 0
      %p100 = por %p98, %p99
      %p101 = scmp.ne.s32.totalorder %s89, %s90
      %p102 = scmp.eq.s32.totalorder %s19, 1
      %p103 = por %p101, %p102
      %p105 = scmp.ne.s32.totalorder %s90, %s104
      %p106 = scmp.eq.s32.totalorder %s19, 0
      %p107 = por %p105, %p106
      %s108 = ssub.s32 %s20, %s32
      %p109 = scmp.eq.s32.totalorder %s108, 0
      %s111 = sadd.s32 %s110, 1
      %s112 = scalar_select %p109, %s110, %s111
      %p115 = pneg %p109
      %p116 = scmp.eq.s32.totalorder %s13, 1
      %p117 = por %p115, %p116
      %p118 = scmp.ne.s32.totalorder %s110, %s113
      %p119 = scmp.eq.s32.totalorder %s13, 0
      %p120 = por %p118, %p119
      %p121 = scmp.ne.s32.totalorder %s110, %s113
      %p122 = scmp.eq.s32.totalorder %s18, 1
      %p123 = por %p121, %p122
      %p124 = scmp.ne.s32.totalorder %s113, %s114
      %p125 = scmp.eq.s32.totalorder %s18, 0
      %p126 = por %p124, %p125
      %p127 = scmp.ne.s32.totalorder %s113, %s114
      %p128 = scmp.eq.s32.totalorder %s19, 1
      %p129 = por %p127, %p128
      %p131 = scmp.ne.s32.totalorder %s114, %s130
      %p132 = scmp.eq.s32.totalorder %s19, 0
      %p133 = por %p131, %p132
      %p134 = scmp.le.s32.totalorder 1, %s13
      %p135 = scmp.lt.s32.totalorder %s13, 3
      %p136 = pnand %p134, %p135
      %p137 = pneg %p136
      // Predicated region
      $region9: #{tpu_custom_call.1} parent=5 // pred_check
        _
      $region10: #{tpu_custom_call.1} parent=5 // pred_check_branch
        %139 = sbr.rel (%p136) target = $region12
      $region11: #{tpu_custom_call.1} parent=5 // pred_region
        %s140 = ssub.s32 %s13, 1
        // Predicated region
        $region13: #{tpu_custom_call.1} parent=11 // pred_check
          %p141 = pneg %p79
        $region14: #{tpu_custom_call.1} parent=11 // pred_check_branch
          %143 = sbr.rel (%p141) target = $region16
        $region15: #{tpu_custom_call.1} parent=11 // pred_region
          %p144 = scmp.lt.s32.totalorder %s23, 0
          %s145 = scalar_select %p144, %s23, 0
          %s146 = scalar_lea.vmem %s1, %s145
        $region16: #{tpu_custom_call.1} parent=11 // pred_fallthru
          _
        // Predicated region
        $region17: #{tpu_custom_call.1} parent=11 // pred_check
          %p147 = pneg %p100
        $region18: #{tpu_custom_call.1} parent=11 // pred_check_branch
          %149 = sbr.rel (%p147) target = $region20
        $region19: #{tpu_custom_call.1} parent=11 // pred_region
          _
        $region20: #{tpu_custom_call.1} parent=11 // pred_fallthru
          _
      $region12: #{tpu_custom_call.1} parent=5 // pred_fallthru
        _
      %p150 = scmp.lt.s32.totalorder %s13, 2
      // Predicated region
      $region21: #{tpu_custom_call.1} parent=5 // pred_check
        %p151 = pneg %p150
      $region22: #{tpu_custom_call.1} parent=5 // pred_check_branch
        %153 = sbr.rel (%p151) target = $region24
      $region23: #{tpu_custom_call.1} parent=5 // pred_region
        // Predicated region
        $region25: #{tpu_custom_call.1} parent=23 // pred_check
          %p154 = pneg %p47
        $region26: #{tpu_custom_call.1} parent=23 // pred_check_branch
          %156 = sbr.rel (%p154) target = $region28
        $region27: #{tpu_custom_call.1} parent=23 // pred_region
          %s157 = smul.u32 64, %s20
          %p158 = scmp.lt.s32.totalorder %s157, 127
          %s159 = scalar_select %p158, %s157, 127
          %p160 = scmp.lt.s32.totalorder %s21, 0
          %s161 = scalar_select %p160, %s21, 0
          %s162 = sadd.s32 %s161, %s159
          %s163 = smul.addr %s162, 8
          %s164 = scalar_lea.vmem %s0, %s163
          %s165 = smul.u32 64, %s20
        $region28: #{tpu_custom_call.1} parent=23 // pred_fallthru
          _
      $region24: #{tpu_custom_call.1} parent=5 // pred_fallthru
        _
      %p166 = scmp.le.s32.totalorder 1, %s13
      %p167 = scmp.lt.s32.totalorder %s13, 3
      %p168 = pnand %p166, %p167
      %p169 = pneg %p168
      // Predicated region
      $region29: #{tpu_custom_call.1} parent=5 // pred_check
        _
      $region30: #{tpu_custom_call.1} parent=5 // pred_check_branch
        %171 = sbr.rel (%p168) target = $region32
      $region31: #{tpu_custom_call.1} parent=5 // pred_region
        %s172 = ssub.s32 %s13, 1
        %s173 = smul.u32 64, %s22
        %p174 = scmp.lt.s32.totalorder %s173, 127
        %s175 = scalar_select %p174, %s173, 127
        %p176 = scmp.lt.s32.totalorder %s23, 0
        %s177 = scalar_select %p176, %s23, 0
        %s178 = sadd.s32 %s177, %s175
        %s179 = smul.addr %s178, 8
        %s180 = scalar_lea.vmem %s0, %s179
        %p181 = pneg %p53
        %p182 = pneg %p50
        %p183 = scmp.lt.s32.totalorder %s23, 0
        %s184 = scalar_select %p183, %s23, 0
        %s185 = scalar_lea.vmem %s1, %s184
        %p186 = pneg %p79
        %p187 = pneg %p76
        %p188 = pneg %p100
        %p189 = pneg %p97
        %p190 = pneg %p126
        %p191 = pneg %p123
        %s192 = sand.u32 %s113, 1
        %s193 = scalar_lea.sflag [#allocation5], %s192
        %s194 = sand.u32 %s113, 1
        %s195 = smul.addr %s194, 4
        %s196 = scalar_lea.vmem [#allocation4], %s195
        %s197 = smul.u32 64, %s22
        %p198 = scmp.lt.s32.totalorder %s197, 127
        %s199 = scalar_select %p198, %s197, 127
        %p200 = scmp.lt.s32.totalorder %s23, 0
        %s201 = scalar_select %p200, %s23, 0
        %s202 = sadd.s32 %s201, %s199
        %s203 = smul.addr %s202, 8
        %s204 = scalar_lea.vmem %s0, %s203
        %s205 = smul.u32 64, %s22
        %p206 = scmp.lt.s32.totalorder %s23, 0
        %s207 = scalar_select %p206, %s23, 0
        %s208 = scalar_lea.vmem %s1, %s207
        %s209 = smul.u32 4, %s22
        %p210 = scmp.eq.s32.totalorder %s23, 0
        // Predicated region
        $region33: #{tpu_custom_call.1} parent=31 // pred_check
          %p211 = pneg %p210
        $region34: #{tpu_custom_call.1} parent=31 // pred_check_branch
          %213 = sbr.rel (%p211) target = $region36
        $region35: #{tpu_custom_call.1} parent=31 // pred_region
          %v214 = vlaneseq
          %vm215 = vcmp.ge.s32.totalorder %v214, 0
          %vm216 = vcmp.lt.s32.totalorder %v214, 512
          %vm217 = vmand %vm215, %vm216
          %218 = vst.msk [vmem:[#allocation2] sm:$0xf] %vm217, 0.0
        $region36: #{tpu_custom_call.1} parent=31 // pred_fallthru
          _
        %v219 = vld [vmem:[%s204] sm:$0xff]
        %v220 = vld [vmem:[%s204 + $0x8] sm:$0xff]
        %v221 = vld [vmem:[%s204 + $0x10] sm:$0xff]
        %v222 = vld [vmem:[%s204 + $0x18] sm:$0xff]
        %v223 = vld [vmem:[%s204 + $0x20] sm:$0xff]
        %v224 = vld [vmem:[%s204 + $0x28] sm:$0xff]
        %v225 = vld [vmem:[%s204 + $0x30] sm:$0xff]
        %v226 = vld [vmem:[%s204 + $0x38] sm:$0xff]
        %v227 = vld [vmem:[%s204 + $0x40] sm:$0xff]
        %v228 = vld [vmem:[%s204 + $0x48] sm:$0xff]
        %v229 = vld [vmem:[%s204 + $0x50] sm:$0xff]
        %v230 = vld [vmem:[%s204 + $0x58] sm:$0xff]
        %v231 = vld [vmem:[%s204 + $0x60] sm:$0xff]
        %v232 = vld [vmem:[%s204 + $0x68] sm:$0xff]
        %v233 = vld [vmem:[%s204 + $0x70] sm:$0xff]
        %v234 = vld [vmem:[%s204 + $0x78] sm:$0xff]
        %v235 = vld [vmem:[%s204 + $0x80] sm:$0xff]
        %v236 = vld [vmem:[%s204 + $0x88] sm:$0xff]
        %v237 = vld [vmem:[%s204 + $0x90] sm:$0xff]
        %v238 = vld [vmem:[%s204 + $0x98] sm:$0xff]
        %v239 = vld [vmem:[%s204 + $0xa0] sm:$0xff]
        %v240 = vld [vmem:[%s204 + $0xa8] sm:$0xff]
        %v241 = vld [vmem:[%s204 + $0xb0] sm:$0xff]
        %v242 = vld [vmem:[%s204 + $0xb8] sm:$0xff]
        %v243 = vld [vmem:[%s204 + $0xc0] sm:$0xff]
        %v244 = vld [vmem:[%s204 + $0xc8] sm:$0xff]
        %v245 = vld [vmem:[%s204 + $0xd0] sm:$0xff]
        %v246 = vld [vmem:[%s204 + $0xd8] sm:$0xff]
        %v247 = vld [vmem:[%s204 + $0xe0] sm:$0xff]
        %v248 = vld [vmem:[%s204 + $0xe8] sm:$0xff]
        %v249 = vld [vmem:[%s204 + $0xf0] sm:$0xff]
        %v250 = vld [vmem:[%s204 + $0xf8] sm:$0xff]
        %v251 = vld [vmem:[%s204 + $0x100] sm:$0xff]
        %v252 = vld [vmem:[%s204 + $0x108] sm:$0xff]
        %v253 = vld [vmem:[%s204 + $0x110] sm:$0xff]
        %v254 = vld [vmem:[%s204 + $0x118] sm:$0xff]
        %v255 = vld [vmem:[%s204 + $0x120] sm:$0xff]
        %v256 = vld [vmem:[%s204 + $0x128] sm:$0xff]
        %v257 = vld [vmem:[%s204 + $0x130] sm:$0xff]
        %v258 = vld [vmem:[%s204 + $0x138] sm:$0xff]
        %v259 = vld [vmem:[%s204 + $0x140] sm:$0xff]
        %v260 = vld [vmem:[%s204 + $0x148] sm:$0xff]
        %v261 = vld [vmem:[%s204 + $0x150] sm:$0xff]
        %v262 = vld [vmem:[%s204 + $0x158] sm:$0xff]
        %v263 = vld [vmem:[%s204 + $0x160] sm:$0xff]
        %v264 = vld [vmem:[%s204 + $0x168] sm:$0xff]
        %v265 = vld [vmem:[%s204 + $0x170] sm:$0xff]
        %v266 = vld [vmem:[%s204 + $0x178] sm:$0xff]
        %v267 = vld [vmem:[%s204 + $0x180] sm:$0xff]
        %v268 = vld [vmem:[%s204 + $0x188] sm:$0xff]
        %v269 = vld [vmem:[%s204 + $0x190] sm:$0xff]
        %v270 = vld [vmem:[%s204 + $0x198] sm:$0xff]
        %v271 = vld [vmem:[%s204 + $0x1a0] sm:$0xff]
        %v272 = vld [vmem:[%s204 + $0x1a8] sm:$0xff]
        %v273 = vld [vmem:[%s204 + $0x1b0] sm:$0xff]
        %v274 = vld [vmem:[%s204 + $0x1b8] sm:$0xff]
        %v275 = vld [vmem:[%s204 + $0x1c0] sm:$0xff]
        %v276 = vld [vmem:[%s204 + $0x1c8] sm:$0xff]
        %v277 = vld [vmem:[%s204 + $0x1d0] sm:$0xff]
        %v278 = vld [vmem:[%s204 + $0x1d8] sm:$0xff]
        %v279 = vld [vmem:[%s204 + $0x1e0] sm:$0xff]
        %v280 = vld [vmem:[%s204 + $0x1e8] sm:$0xff]
        %v281 = vld [vmem:[%s204 + $0x1f0] sm:$0xff]
        %v282 = vld [vmem:[%s204 + $0x1f8] sm:$0xff]
        %v283 = vld [vmem:[%s208] sm:$0x1]
        %v284 = vld [vmem:[#allocation2] sm:$0xf]
        %vm285 = vcmask 261120
        %v287 = vsel %vm285, %v283, 0
        %v290 = vsel %vm285, %v219, 0
        %v293 = vsel %vm285, %v220, 0
        %v296 = vsel %vm285, %v221, 0
        %v299 = vsel %vm285, %v222, 0
        %v302 = vsel %vm285, %v223, 0
        %v305 = vsel %vm285, %v224, 0
        %v308 = vsel %vm285, %v225, 0
        %v311 = vsel %vm285, %v226, 0
        %v314 = vsel %vm285, %v227, 0
        %v317 = vsel %vm285, %v228, 0
        %v320 = vsel %vm285, %v229, 0
        %v323 = vsel %vm285, %v230, 0
        %v326 = vsel %vm285, %v231, 0
        %v329 = vsel %vm285, %v232, 0
        %v332 = vsel %vm285, %v233, 0
        %v335 = vsel %vm285, %v234, 0
        %v338 = vsel %vm285, %v235, 0
        %v341 = vsel %vm285, %v236, 0
        %v344 = vsel %vm285, %v237, 0
        %v347 = vsel %vm285, %v238, 0
        %v350 = vsel %vm285, %v239, 0
        %v353 = vsel %vm285, %v240, 0
        %v356 = vsel %vm285, %v241, 0
        %v359 = vsel %vm285, %v242, 0
        %v362 = vsel %vm285, %v243, 0
        %v365 = vsel %vm285, %v244, 0
        %v368 = vsel %vm285, %v245, 0
        %v371 = vsel %vm285, %v246, 0
        %v374 = vsel %vm285, %v247, 0
        %v377 = vsel %vm285, %v248, 0
        %v380 = vsel %vm285, %v249, 0
        %v383 = vsel %vm285, %v250, 0
        %v386 = vsel %vm285, %v251, 0
        %v389 = vsel %vm285, %v252, 0
        %v392 = vsel %vm285, %v253, 0
        %v395 = vsel %vm285, %v254, 0
        %v398 = vsel %vm285, %v255, 0
        %v401 = vsel %vm285, %v256, 0
        %v404 = vsel %vm285, %v257, 0
        %v407 = vsel %vm285, %v258, 0
        %v410 = vsel %vm285, %v259, 0
        %v413 = vsel %vm285, %v260, 0
        %v416 = vsel %vm285, %v261, 0
        %v419 = vsel %vm285, %v262, 0
        %v422 = vsel %vm285, %v263, 0
        %v425 = vsel %vm285, %v264, 0
        %v428 = vsel %vm285, %v265, 0
        %v431 = vsel %vm285, %v266, 0
        %v434 = vsel %vm285, %v267, 0
        %v437 = vsel %vm285, %v268, 0
        %v440 = vsel %vm285, %v269, 0
        %v443 = vsel %vm285, %v270, 0
        %v446 = vsel %vm285, %v271, 0
        %v449 = vsel %vm285, %v272, 0
        %v452 = vsel %vm285, %v273, 0
        %v455 = vsel %vm285, %v274, 0
        %v458 = vsel %vm285, %v275, 0
        %v461 = vsel %vm285, %v276, 0
        %v464 = vsel %vm285, %v277, 0
        %v467 = vsel %vm285, %v278, 0
        %v470 = vsel %vm285, %v279, 0
        %v473 = vsel %vm285, %v280, 0
        %v476 = vsel %vm285, %v281, 0
        %v479 = vsel %vm285, %v282, 0
        %481 = vmatprep.subr.mxu0 0.0
        %v482 = vand.u32 %v290, 4294901760
        %483 = vmatpush1.xpose.msra.mxu0 %v482
        %484 = vmatprep.subr.mxu0 0.0
        %v485 = vand.u32 %v293, 4294901760
        %486 = vmatpush1.xpose.msra.mxu0 %v485
        %487 = vmatprep.subr.mxu0 0.0
        %v488 = vand.u32 %v296, 4294901760
        %489 = vmatpush1.xpose.msra.mxu0 %v488
        %490 = vmatprep.subr.mxu0 0.0
        %v491 = vand.u32 %v299, 4294901760
        %492 = vmatpush1.xpose.msra.mxu0 %v491
        %493 = vmatprep.subr.mxu0 0.0
        %v494 = vand.u32 %v302, 4294901760
        %495 = vmatpush1.xpose.msra.mxu0 %v494
        %496 = vmatprep.subr.mxu0 0.0
        %v497 = vand.u32 %v305, 4294901760
        %498 = vmatpush1.xpose.msra.mxu0 %v497
        %499 = vmatprep.subr.mxu0 0.0
        %v500 = vand.u32 %v308, 4294901760
        %501 = vmatpush1.xpose.msra.mxu0 %v500
        %502 = vmatprep.subr.mxu0 0.0
        %v503 = vand.u32 %v311, 4294901760
        %504 = vmatpush1.xpose.msra.mxu0 %v503
        %505 = vmatprep.subr.mxu0 0.0
        %v506 = vand.u32 %v314, 4294901760
        %507 = vmatpush1.xpose.msra.mxu0 %v506
        %508 = vmatprep.subr.mxu0 0.0
        %v509 = vand.u32 %v317, 4294901760
        %510 = vmatpush1.xpose.msra.mxu0 %v509
        %511 = vmatprep.subr.mxu0 0.0
        %v512 = vand.u32 %v320, 4294901760
        %513 = vmatpush1.xpose.msra.mxu0 %v512
        %514 = vmatprep.subr.mxu0 0.0
        %v515 = vand.u32 %v323, 4294901760
        %516 = vmatpush1.xpose.msra.mxu0 %v515
        %517 = vmatprep.subr.mxu0 0.0
        %v518 = vand.u32 %v326, 4294901760
        %519 = vmatpush1.xpose.msra.mxu0 %v518
        %520 = vmatprep.subr.mxu0 0.0
        %v521 = vand.u32 %v329, 4294901760
        %522 = vmatpush1.xpose.msra.mxu0 %v521
        %523 = vmatprep.subr.mxu0 0.0
        %v524 = vand.u32 %v332, 4294901760
        %525 = vmatpush1.xpose.msra.mxu0 %v524
        %526 = vmatprep.subr.mxu0 0.0
        %v527 = vand.u32 %v335, 4294901760
        %528 = vmatpush1.xpose.msra.mxu0 %v527
        %529 = vmatprep.subr.mxu0 0.0
        %v530 = vand.u32 %v338, 4294901760
        %531 = vmatpush1.xpose.msra.mxu0 %v530
        %532 = vmatprep.subr.mxu0 0.0
        %v533 = vand.u32 %v341, 4294901760
        %534 = vmatpush1.xpose.msra.mxu0 %v533
        %535 = vmatprep.subr.mxu0 0.0
        %v536 = vand.u32 %v344, 4294901760
        %537 = vmatpush1.xpose.msra.mxu0 %v536
        %538 = vmatprep.subr.mxu0 0.0
        %v539 = vand.u32 %v347, 4294901760
        %540 = vmatpush1.xpose.msra.mxu0 %v539
        %541 = vmatprep.subr.mxu0 0.0
        %v542 = vand.u32 %v350, 4294901760
        %543 = vmatpush1.xpose.msra.mxu0 %v542
        %544 = vmatprep.subr.mxu0 0.0
        %v545 = vand.u32 %v353, 4294901760
        %546 = vmatpush1.xpose.msra.mxu0 %v545
        %547 = vmatprep.subr.mxu0 0.0
        %v548 = vand.u32 %v356, 4294901760
        %549 = vmatpush1.xpose.msra.mxu0 %v548
        %550 = vmatprep.subr.mxu0 0.0
        %v551 = vand.u32 %v359, 4294901760
        %552 = vmatpush1.xpose.msra.mxu0 %v551
        %553 = vmatprep.subr.mxu0 0.0
        %v554 = vand.u32 %v362, 4294901760
        %555 = vmatpush1.xpose.msra.mxu0 %v554
        %556 = vmatprep.subr.mxu0 0.0
        %v557 = vand.u32 %v365, 4294901760
        %558 = vmatpush1.xpose.msra.mxu0 %v557
        %559 = vmatprep.subr.mxu0 0.0
        %v560 = vand.u32 %v368, 4294901760
        %561 = vmatpush1.xpose.msra.mxu0 %v560
        %562 = vmatprep.subr.mxu0 0.0
        %v563 = vand.u32 %v371, 4294901760
        %564 = vmatpush1.xpose.msra.mxu0 %v563
        %565 = vmatprep.subr.mxu0 0.0
        %v566 = vand.u32 %v374, 4294901760
        %567 = vmatpush1.xpose.msra.mxu0 %v566
        %568 = vmatprep.subr.mxu0 0.0
        %v569 = vand.u32 %v377, 4294901760
        %570 = vmatpush1.xpose.msra.mxu0 %v569
        %571 = vmatprep.subr.mxu0 0.0
        %v572 = vand.u32 %v380, 4294901760
        %573 = vmatpush1.xpose.msra.mxu0 %v572
        %574 = vmatprep.subr.mxu0 0.0
        %v575 = vand.u32 %v383, 4294901760
        %576 = vmatpush1.xpose.msra.mxu0 %v575
        %577 = vmatprep.mubr.f32.mxu0 0.0
        %v578 = vand.u32 %v287, 4294901760
        %v579 = vsub.f32 %v287, %v578
        %v580 = vand.u32 %v579, 4294901760
        %v581 = vsub.f32 %v579, %v580
        %v582 = vand.u32 %v581, 4294901760
        %583 = vmatmul.mubr.f32.gmra.mrb[0].mxu0 %v582
        %v584 = vpop.f32.mrb[0].mxu0
        %v585 = vadd.f32 0.0, %v584
        %v586 = vpop.f32.mrb[0].mxu0
        %v587 = vadd.f32 0.0, %v586
        %588 = vdwg.mxu0
        %589 = vmatprep.subr.mxu0 0.0
        %v590 = vand.u32 %v290, 4294901760
        %v591 = vsub.f32 %v290, %v590
        %v592 = vand.u32 %v591, 4294901760
        %v593 = vsub.f32 %v591, %v592
        %v594 = vand.u32 %v593, 4294901760
        %595 = vmatpush1.xpose.msra.mxu0 %v594
        %596 = vmatprep.subr.mxu0 0.0
        %v597 = vand.u32 %v293, 4294901760
        %v598 = vsub.f32 %v293, %v597
        %v599 = vand.u32 %v598, 4294901760
        %v600 = vsub.f32 %v598, %v599
        %v601 = vand.u32 %v600, 4294901760
        %602 = vmatpush1.xpose.msra.mxu0 %v601
        %603 = vmatprep.subr.mxu0 0.0
        %v604 = vand.u32 %v296, 4294901760
        %v605 = vsub.f32 %v296, %v604
        %v606 = vand.u32 %v605, 4294901760
        %v607 = vsub.f32 %v605, %v606
        %v608 = vand.u32 %v607, 4294901760
        %609 = vmatpush1.xpose.msra.mxu0 %v608
        %610 = vmatprep.subr.mxu0 0.0
        %v611 = vand.u32 %v299, 4294901760
        %v612 = vsub.f32 %v299, %v611
        %v613 = vand.u32 %v612, 4294901760
        %v614 = vsub.f32 %v612, %v613
        %v615 = vand.u32 %v614, 4294901760
        %616 = vmatpush1.xpose.msra.mxu0 %v615
        %617 = vmatprep.subr.mxu0 0.0
        %v618 = vand.u32 %v302, 4294901760
        %v619 = vsub.f32 %v302, %v618
        %v620 = vand.u32 %v619, 4294901760
        %v621 = vsub.f32 %v619, %v620
        %v622 = vand.u32 %v621, 4294901760
        %623 = vmatpush1.xpose.msra.mxu0 %v622
        %624 = vmatprep.subr.mxu0 0.0
        %v625 = vand.u32 %v305, 4294901760
        %v626 = vsub.f32 %v305, %v625
        %v627 = vand.u32 %v626, 4294901760
        %v628 = vsub.f32 %v626, %v627
        %v629 = vand.u32 %v628, 4294901760
        %630 = vmatpush1.xpose.msra.mxu0 %v629
        %631 = vmatprep.subr.mxu0 0.0
        %v632 = vand.u32 %v308, 4294901760
        %v633 = vsub.f32 %v308, %v632
        %v634 = vand.u32 %v633, 4294901760
        %v635 = vsub.f32 %v633, %v634
        %v636 = vand.u32 %v635, 4294901760
        %637 = vmatpush1.xpose.msra.mxu0 %v636
        %638 = vmatprep.subr.mxu0 0.0
        %v639 = vand.u32 %v311, 4294901760
        %v640 = vsub.f32 %v311, %v639
        %v641 = vand.u32 %v640, 4294901760
        %v642 = vsub.f32 %v640, %v641
        %v643 = vand.u32 %v642, 4294901760
        %644 = vmatpush1.xpose.msra.mxu0 %v643
        %645 = vmatprep.subr.mxu0 0.0
        %v646 = vand.u32 %v314, 4294901760
        %v647 = vsub.f32 %v314, %v646
        %v648 = vand.u32 %v647, 4294901760
        %v649 = vsub.f32 %v647, %v648
        %v650 = vand.u32 %v649, 4294901760
        %651 = vmatpush1.xpose.msra.mxu0 %v650
        %652 = vmatprep.subr.mxu0 0.0
        %v653 = vand.u32 %v317, 4294901760
        %v654 = vsub.f32 %v317, %v653
        %v655 = vand.u32 %v654, 4294901760
        %v656 = vsub.f32 %v654, %v655
        %v657 = vand.u32 %v656, 4294901760
        %658 = vmatpush1.xpose.msra.mxu0 %v657
        %659 = vmatprep.subr.mxu0 0.0
        %v660 = vand.u32 %v320, 4294901760
        %v661 = vsub.f32 %v320, %v660
        %v662 = vand.u32 %v661, 4294901760
        %v663 = vsub.f32 %v661, %v662
        %v664 = vand.u32 %v663, 4294901760
        %665 = vmatpush1.xpose.msra.mxu0 %v664
        %666 = vmatprep.subr.mxu0 0.0
        %v667 = vand.u32 %v323, 4294901760
        %v668 = vsub.f32 %v323, %v667
        %v669 = vand.u32 %v668, 4294901760
        %v670 = vsub.f32 %v668, %v669
        %v671 = vand.u32 %v670, 4294901760
        %672 = vmatpush1.xpose.msra.mxu0 %v671
        %673 = vmatprep.subr.mxu0 0.0
        %v674 = vand.u32 %v326, 4294901760
        %v675 = vsub.f32 %v326, %v674
        %v676 = vand.u32 %v675, 4294901760
        %v677 = vsub.f32 %v675, %v676
        %v678 = vand.u32 %v677, 4294901760
        %679 = vmatpush1.xpose.msra.mxu0 %v678
        %680 = vmatprep.subr.mxu0 0.0
        %v681 = vand.u32 %v329, 4294901760
        %v682 = vsub.f32 %v329, %v681
        %v683 = vand.u32 %v682, 4294901760
        %v684 = vsub.f32 %v682, %v683
        %v685 = vand.u32 %v684, 4294901760
        %686 = vmatpush1.xpose.msra.mxu0 %v685
        %687 = vmatprep.subr.mxu0 0.0
        %v688 = vand.u32 %v332, 4294901760
        %v689 = vsub.f32 %v332, %v688
        %v690 = vand.u32 %v689, 4294901760
        %v691 = vsub.f32 %v689, %v690
        %v692 = vand.u32 %v691, 4294901760
        %693 = vmatpush1.xpose.msra.mxu0 %v692
        %694 = vmatprep.subr.mxu0 0.0
        %v695 = vand.u32 %v335, 4294901760
        %v696 = vsub.f32 %v335, %v695
        %v697 = vand.u32 %v696, 4294901760
        %v698 = vsub.f32 %v696, %v697
        %v699 = vand.u32 %v698, 4294901760
        %700 = vmatpush1.xpose.msra.mxu0 %v699
        %701 = vmatprep.subr.mxu0 0.0
        %v702 = vand.u32 %v338, 4294901760
        %v703 = vsub.f32 %v338, %v702
        %v704 = vand.u32 %v703, 4294901760
        %v705 = vsub.f32 %v703, %v704
        %v706 = vand.u32 %v705, 4294901760
        %707 = vmatpush1.xpose.msra.mxu0 %v706
        %708 = vmatprep.subr.mxu0 0.0
        %v709 = vand.u32 %v341, 4294901760
        %v710 = vsub.f32 %v341, %v709
        %v711 = vand.u32 %v710, 4294901760
        %v712 = vsub.f32 %v710, %v711
        %v713 = vand.u32 %v712, 4294901760
        %714 = vmatpush1.xpose.msra.mxu0 %v713
        %715 = vmatprep.subr.mxu0 0.0
        %v716 = vand.u32 %v344, 4294901760
        %v717 = vsub.f32 %v344, %v716
        %v718 = vand.u32 %v717, 4294901760
        %v719 = vsub.f32 %v717, %v718
        %v720 = vand.u32 %v719, 4294901760
        %721 = vmatpush1.xpose.msra.mxu0 %v720
        %722 = vmatprep.subr.mxu0 0.0
        %v723 = vand.u32 %v347, 4294901760
        %v724 = vsub.f32 %v347, %v723
        %v725 = vand.u32 %v724, 4294901760
        %v726 = vsub.f32 %v724, %v725
        %v727 = vand.u32 %v726, 4294901760
        %728 = vmatpush1.xpose.msra.mxu0 %v727
        %729 = vmatprep.subr.mxu0 0.0
        %v730 = vand.u32 %v350, 4294901760
        %v731 = vsub.f32 %v350, %v730
        %v732 = vand.u32 %v731, 4294901760
        %v733 = vsub.f32 %v731, %v732
        %v734 = vand.u32 %v733, 4294901760
        %735 = vmatpush1.xpose.msra.mxu0 %v734
        %736 = vmatprep.subr.mxu0 0.0
        %v737 = vand.u32 %v353, 4294901760
        %v738 = vsub.f32 %v353, %v737
        %v739 = vand.u32 %v738, 4294901760
        %v740 = vsub.f32 %v738, %v739
        %v741 = vand.u32 %v740, 4294901760
        %742 = vmatpush1.xpose.msra.mxu0 %v741
        %743 = vmatprep.subr.mxu0 0.0
        %v744 = vand.u32 %v356, 4294901760
        %v745 = vsub.f32 %v356, %v744
        %v746 = vand.u32 %v745, 4294901760
        %v747 = vsub.f32 %v745, %v746
        %v748 = vand.u32 %v747, 4294901760
        %749 = vmatpush1.xpose.msra.mxu0 %v748
        %750 = vmatprep.subr.mxu0 0.0
        %v751 = vand.u32 %v359, 4294901760
        %v752 = vsub.f32 %v359, %v751
        %v753 = vand.u32 %v752, 4294901760
        %v754 = vsub.f32 %v752, %v753
        %v755 = vand.u32 %v754, 4294901760
        %756 = vmatpush1.xpose.msra.mxu0 %v755
        %757 = vmatprep.subr.mxu0 0.0
        %v758 = vand.u32 %v362, 4294901760
        %v759 = vsub.f32 %v362, %v758
        %v760 = vand.u32 %v759, 4294901760
        %v761 = vsub.f32 %v759, %v760
        %v762 = vand.u32 %v761, 4294901760
        %763 = vmatpush1.xpose.msra.mxu0 %v762
        %764 = vmatprep.subr.mxu0 0.0
        %v765 = vand.u32 %v365, 4294901760
        %v766 = vsub.f32 %v365, %v765
        %v767 = vand.u32 %v766, 4294901760
        %v768 = vsub.f32 %v766, %v767
        %v769 = vand.u32 %v768, 4294901760
        %770 = vmatpush1.xpose.msra.mxu0 %v769
        %771 = vmatprep.subr.mxu0 0.0
        %v772 = vand.u32 %v368, 4294901760
        %v773 = vsub.f32 %v368, %v772
        %v774 = vand.u32 %v773, 4294901760
        %v775 = vsub.f32 %v773, %v774
        %v776 = vand.u32 %v775, 4294901760
        %777 = vmatpush1.xpose.msra.mxu0 %v776
        %778 = vmatprep.subr.mxu0 0.0
        %v779 = vand.u32 %v371, 4294901760
        %v780 = vsub.f32 %v371, %v779
        %v781 = vand.u32 %v780, 4294901760
        %v782 = vsub.f32 %v780, %v781
        %v783 = vand.u32 %v782, 4294901760
        %784 = vmatpush1.xpose.msra.mxu0 %v783
        %785 = vmatprep.subr.mxu0 0.0
        %v786 = vand.u32 %v374, 4294901760
        %v787 = vsub.f32 %v374, %v786
        %v788 = vand.u32 %v787, 4294901760
        %v789 = vsub.f32 %v787, %v788
        %v790 = vand.u32 %v789, 4294901760
        %791 = vmatpush1.xpose.msra.mxu0 %v790
        %792 = vmatprep.subr.mxu0 0.0
        %v793 = vand.u32 %v377, 4294901760
        %v794 = vsub.f32 %v377, %v793
        %v795 = vand.u32 %v794, 4294901760
        %v796 = vsub.f32 %v794, %v795
        %v797 = vand.u32 %v796, 4294901760
        %798 = vmatpush1.xpose.msra.mxu0 %v797
        %799 = vmatprep.subr.mxu0 0.0
        %v800 = vand.u32 %v380, 4294901760
        %v801 = vsub.f32 %v380, %v800
        %v802 = vand.u32 %v801, 4294901760
        %v803 = vsub.f32 %v801, %v802
        %v804 = vand.u32 %v803, 4294901760
        %805 = vmatpush1.xpose.msra.mxu0 %v804
        %806 = vmatprep.subr.mxu0 0.0
        %v807 = vand.u32 %v383, 4294901760
        %v808 = vsub.f32 %v383, %v807
        %v809 = vand.u32 %v808, 4294901760
        %v810 = vsub.f32 %v808, %v809
        %v811 = vand.u32 %v810, 4294901760
        %812 = vmatpush1.xpose.msra.mxu0 %v811
        %813 = vmatprep.mubr.f32.mxu0 0.0
        %v814 = vand.u32 %v287, 4294901760
        %815 = vmatmul.mubr.f32.gmra.mrb[0].mxu0 %v814
        %v816 = vpop.f32.mrb[0].mxu0
        %v817 = vadd.f32 %v585, %v816
        %v818 = vpop.f32.mrb[0].mxu0
        %v819 = vadd.f32 %v587, %v818
        %820 = vdwg.mxu0
        %821 = vmatprep.subr.mxu0 0.0
        %v822 = vand.u32 %v290, 4294901760
        %v823 = vsub.f32 %v290, %v822
        %824 = vmatpush1.xpose.msra.mxu0 %v823
        %825 = vmatprep.subr.mxu0 0.0
        %v826 = vand.u32 %v293, 4294901760
        %v827 = vsub.f32 %v293, %v826
        %828 = vmatpush1.xpose.msra.mxu0 %v827
        %829 = vmatprep.subr.mxu0 0.0
        %v830 = vand.u32 %v296, 4294901760
        %v831 = vsub.f32 %v296, %v830
        %832 = vmatpush1.xpose.msra.mxu0 %v831
        %833 = vmatprep.subr.mxu0 0.0
        %v834 = vand.u32 %v299, 4294901760
        %v835 = vsub.f32 %v299, %v834
        %836 = vmatpush1.xpose.msra.mxu0 %v835
        %837 = vmatprep.subr.mxu0 0.0
        %v838 = vand.u32 %v302, 4294901760
        %v839 = vsub.f32 %v302, %v838
        %840 = vmatpush1.xpose.msra.mxu0 %v839
        %841 = vmatprep.subr.mxu0 0.0
        %v842 = vand.u32 %v305, 4294901760
        %v843 = vsub.f32 %v305, %v842
        %844 = vmatpush1.xpose.msra.mxu0 %v843
        %845 = vmatprep.subr.mxu0 0.0
        %v846 = vand.u32 %v308, 4294901760
        %v847 = vsub.f32 %v308, %v846
        %848 = vmatpush1.xpose.msra.mxu0 %v847
        %849 = vmatprep.subr.mxu0 0.0
        %v850 = vand.u32 %v311, 4294901760
        %v851 = vsub.f32 %v311, %v850
        %852 = vmatpush1.xpose.msra.mxu0 %v851
        %853 = vmatprep.subr.mxu0 0.0
        %v854 = vand.u32 %v314, 4294901760
        %v855 = vsub.f32 %v314, %v854
        %856 = vmatpush1.xpose.msra.mxu0 %v855
        %857 = vmatprep.subr.mxu0 0.0
        %v858 = vand.u32 %v317, 4294901760
        %v859 = vsub.f32 %v317, %v858
        %860 = vmatpush1.xpose.msra.mxu0 %v859
        %861 = vmatprep.subr.mxu0 0.0
        %v862 = vand.u32 %v320, 4294901760
        %v863 = vsub.f32 %v320, %v862
        %864 = vmatpush1.xpose.msra.mxu0 %v863
        %865 = vmatprep.subr.mxu0 0.0
        %v866 = vand.u32 %v323, 4294901760
        %v867 = vsub.f32 %v323, %v866
        %868 = vmatpush1.xpose.msra.mxu0 %v867
        %869 = vmatprep.subr.mxu0 0.0
        %v870 = vand.u32 %v326, 4294901760
        %v871 = vsub.f32 %v326, %v870
        %872 = vmatpush1.xpose.msra.mxu0 %v871
        %873 = vmatprep.subr.mxu0 0.0
        %v874 = vand.u32 %v329, 4294901760
        %v875 = vsub.f32 %v329, %v874
        %876 = vmatpush1.xpose.msra.mxu0 %v875
        %877 = vmatprep.subr.mxu0 0.0
        %v878 = vand.u32 %v332, 4294901760
        %v879 = vsub.f32 %v332, %v878
        %880 = vmatpush1.xpose.msra.mxu0 %v879
        %881 = vmatprep.subr.mxu0 0.0
        %v882 = vand.u32 %v335, 4294901760
        %v883 = vsub.f32 %v335, %v882
        %884 = vmatpush1.xpose.msra.mxu0 %v883
        %885 = vmatprep.subr.mxu0 0.0
        %v886 = vand.u32 %v338, 4294901760
        %v887 = vsub.f32 %v338, %v886
        %888 = vmatpush1.xpose.msra.mxu0 %v887
        %889 = vmatprep.subr.mxu0 0.0
        %v890 = vand.u32 %v341, 4294901760
        %v891 = vsub.f32 %v341, %v890
        %892 = vmatpush1.xpose.msra.mxu0 %v891
        %893 = vmatprep.subr.mxu0 0.0
        %v894 = vand.u32 %v344, 4294901760
        %v895 = vsub.f32 %v344, %v894
        %896 = vmatpush1.xpose.msra.mxu0 %v895
        %897 = vmatprep.subr.mxu0 0.0
        %v898 = vand.u32 %v347, 4294901760
        %v899 = vsub.f32 %v347, %v898
        %900 = vmatpush1.xpose.msra.mxu0 %v899
        %901 = vmatprep.subr.mxu0 0.0
        %v902 = vand.u32 %v350, 4294901760
        %v903 = vsub.f32 %v350, %v902
        %904 = vmatpush1.xpose.msra.mxu0 %v903
        %905 = vmatprep.subr.mxu0 0.0
        %v906 = vand.u32 %v353, 4294901760
        %v907 = vsub.f32 %v353, %v906
        %908 = vmatpush1.xpose.msra.mxu0 %v907
        %909 = vmatprep.subr.mxu0 0.0
        %v910 = vand.u32 %v356, 4294901760
        %v911 = vsub.f32 %v356, %v910
        %912 = vmatpush1.xpose.msra.mxu0 %v911
        %913 = vmatprep.subr.mxu0 0.0
        %v914 = vand.u32 %v359, 4294901760
        %v915 = vsub.f32 %v359, %v914
        %916 = vmatpush1.xpose.msra.mxu0 %v915
        %917 = vmatprep.subr.mxu0 0.0
        %v918 = vand.u32 %v362, 4294901760
        %v919 = vsub.f32 %v362, %v918
        %920 = vmatpush1.xpose.msra.mxu0 %v919
        %921 = vmatprep.subr.mxu0 0.0
        %v922 = vand.u32 %v365, 4294901760
        %v923 = vsub.f32 %v365, %v922
        %924 = vmatpush1.xpose.msra.mxu0 %v923
        %925 = vmatprep.subr.mxu0 0.0
        %v926 = vand.u32 %v368, 4294901760
        %v927 = vsub.f32 %v368, %v926
        %928 = vmatpush1.xpose.msra.mxu0 %v927
        %929 = vmatprep.subr.mxu0 0.0
        %v930 = vand.u32 %v371, 4294901760
        %v931 = vsub.f32 %v371, %v930
        %932 = vmatpush1.xpose.msra.mxu0 %v931
        %933 = vmatprep.subr.mxu0 0.0
        %v934 = vand.u32 %v374, 4294901760
        %v935 = vsub.f32 %v374, %v934
        %936 = vmatpush1.xpose.msra.mxu0 %v935
        %937 = vmatprep.subr.mxu0 0.0
        %v938 = vand.u32 %v377, 4294901760
        %v939 = vsub.f32 %v377, %v938
        %940 = vmatpush1.xpose.msra.mxu0 %v939
        %941 = vmatprep.subr.mxu0 0.0
        %v942 = vand.u32 %v380, 4294901760
        %v943 = vsub.f32 %v380, %v942
        %944 = vmatpush1.xpose.msra.mxu0 %v943
        %945 = vmatprep.subr.mxu0 0.0
        %v946 = vand.u32 %v383, 4294901760
        %v947 = vsub.f32 %v383, %v946
        %948 = vmatpush1.xpose.msra.mxu0 %v947
        %949 = vmatprep.mubr.f32.mxu0 0.0
        %v950 = vand.u32 %v287, 4294901760
        %v951 = vsub.f32 %v287, %v950
        %952 = vmatmul.mubr.f32.gmra.mrb[0].mxu0 %v951
        %v953 = vpop.f32.mrb[0].mxu0
        %v954 = vadd.f32 %v817, %v953
        %v955 = vpop.f32.mrb[0].mxu0
        %v956 = vadd.f32 %v819, %v955
        %957 = vdwg.mxu0
        %958 = vmatprep.subr.mxu0 0.0
        %v959 = vand.u32 %v290, 4294901760
        %960 = vmatpush1.xpose.msra.mxu0 %v959
        %961 = vmatprep.subr.mxu0 0.0
        %v962 = vand.u32 %v293, 4294901760
        %963 = vmatpush1.xpose.msra.mxu0 %v962
        %964 = vmatprep.subr.mxu0 0.0
        %v965 = vand.u32 %v296, 4294901760
        %966 = vmatpush1.xpose.msra.mxu0 %v965
        %967 = vmatprep.subr.mxu0 0.0
        %v968 = vand.u32 %v299, 4294901760
        %969 = vmatpush1.xpose.msra.mxu0 %v968
        %970 = vmatprep.subr.mxu0 0.0
        %v971 = vand.u32 %v302, 4294901760
        %972 = vmatpush1.xpose.msra.mxu0 %v971
        %973 = vmatprep.subr.mxu0 0.0
        %v974 = vand.u32 %v305, 4294901760
        %975 = vmatpush1.xpose.msra.mxu0 %v974
        %976 = vmatprep.subr.mxu0 0.0
        %v977 = vand.u32 %v308, 4294901760
        %978 = vmatpush1.xpose.msra.mxu0 %v977
        %979 = vmatprep.subr.mxu0 0.0
        %v980 = vand.u32 %v311, 4294901760
        %981 = vmatpush1.xpose.msra.mxu0 %v980
        %982 = vmatprep.subr.mxu0 0.0
        %v983 = vand.u32 %v314, 4294901760
        %984 = vmatpush1.xpose.msra.mxu0 %v983
        %985 = vmatprep.subr.mxu0 0.0
        %v986 = vand.u32 %v317, 4294901760
        %987 = vmatpush1.xpose.msra.mxu0 %v986
        %988 = vmatprep.subr.mxu0 0.0
        %v989 = vand.u32 %v320, 4294901760
        %990 = vmatpush1.xpose.msra.mxu0 %v989
        %991 = vmatprep.subr.mxu0 0.0
        %v992 = vand.u32 %v323, 4294901760
        %993 = vmatpush1.xpose.msra.mxu0 %v992
        %994 = vmatprep.subr.mxu0 0.0
        %v995 = vand.u32 %v326, 4294901760
        %996 = vmatpush1.xpose.msra.mxu0 %v995
        %997 = vmatprep.subr.mxu0 0.0
        %v998 = vand.u32 %v329, 4294901760
        %999 = vmatpush1.xpose.msra.mxu0 %v998
        %1000 = vmatprep.subr.mxu0 0.0
        %v1001 = vand.u32 %v332, 4294901760
        %1002 = vmatpush1.xpose.msra.mxu0 %v1001
        %1003 = vmatprep.subr.mxu0 0.0
        %v1004 = vand.u32 %v335, 4294901760
        %1005 = vmatpush1.xpose.msra.mxu0 %v1004
        %1006 = vmatprep.subr.mxu0 0.0
        %v1007 = vand.u32 %v338, 4294901760
        %1008 = vmatpush1.xpose.msra.mxu0 %v1007
        %1009 = vmatprep.subr.mxu0 0.0
        %v1010 = vand.u32 %v341, 4294901760
        %1011 = vmatpush1.xpose.msra.mxu0 %v1010
        %1012 = vmatprep.subr.mxu0 0.0
        %v1013 = vand.u32 %v344, 4294901760
        %1014 = vmatpush1.xpose.msra.mxu0 %v1013
        %1015 = vmatprep.subr.mxu0 0.0
        %v1016 = vand.u32 %v347, 4294901760
        %1017 = vmatpush1.xpose.msra.mxu0 %v1016
        %1018 = vmatprep.subr.mxu0 0.0
        %v1019 = vand.u32 %v350, 4294901760
        %1020 = vmatpush1.xpose.msra.mxu0 %v1019
        %1021 = vmatprep.subr.mxu0 0.0
        %v1022 = vand.u32 %v353, 4294901760
        %1023 = vmatpush1.xpose.msra.mxu0 %v1022
        %1024 = vmatprep.subr.mxu0 0.0
        %v1025 = vand.u32 %v356, 4294901760
        %1026 = vmatpush1.xpose.msra.mxu0 %v1025
        %1027 = vmatprep.subr.mxu0 0.0
        %v1028 = vand.u32 %v359, 4294901760
        %1029 = vmatpush1.xpose.msra.mxu0 %v1028
        %1030 = vmatprep.subr.mxu0 0.0
        %v1031 = vand.u32 %v362, 4294901760
        %1032 = vmatpush1.xpose.msra.mxu0 %v1031
        %1033 = vmatprep.subr.mxu0 0.0
        %v1034 = vand.u32 %v365, 4294901760
        %1035 = vmatpush1.xpose.msra.mxu0 %v1034
        %1036 = vmatprep.subr.mxu0 0.0
        %v1037 = vand.u32 %v368, 4294901760
        %1038 = vmatpush1.xpose.msra.mxu0 %v1037
        %1039 = vmatprep.subr.mxu0 0.0
        %v1040 = vand.u32 %v371, 4294901760
        %1041 = vmatpush1.xpose.msra.mxu0 %v1040
        %1042 = vmatprep.subr.mxu0 0.0
        %v1043 = vand.u32 %v374, 4294901760
        %1044 = vmatpush1.xpose.msra.mxu0 %v1043
        %1045 = vmatprep.subr.mxu0 0.0
        %v1046 = vand.u32 %v377, 4294901760
        %1047 = vmatpush1.xpose.msra.mxu0 %v1046
        %1048 = vmatprep.subr.mxu0 0.0
        %v1049 = vand.u32 %v380, 4294901760
        %1050 = vmatpush1.xpose.msra.mxu0 %v1049
        %1051 = vmatprep.subr.mxu0 0.0
        %v1052 = vand.u32 %v383, 4294901760
        %1053 = vmatpush1.xpose.msra.mxu0 %v1052
        %1054 = vmatprep.mubr.f32.mxu0 0.0
        %v1055 = vand.u32 %v287, 4294901760
        %v1056 = vsub.f32 %v287, %v1055
        %v1057 = vand.u32 %v1056, 4294901760
        %1058 = vmatmul.mubr.f32.gmra.mrb[0].mxu0 %v1057
        %v1059 = vpop.f32.mrb[0].mxu0
        %v1060 = vadd.f32 %v954, %v1059
        %v1061 = vpop.f32.mrb[0].mxu0
        %v1062 = vadd.f32 %v956, %v1061
        %1063 = vdwg.mxu0
        %1064 = vmatprep.subr.mxu0 0.0
        %v1065 = vand.u32 %v290, 4294901760
        %v1066 = vsub.f32 %v290, %v1065
        %v1067 = vand.u32 %v1066, 4294901760
        %1068 = vmatpush1.xpose.msra.mxu0 %v1067
        %1069 = vmatprep.subr.mxu0 0.0
        %v1070 = vand.u32 %v293, 4294901760
        %v1071 = vsub.f32 %v293, %v1070
        %v1072 = vand.u32 %v1071, 4294901760
        %1073 = vmatpush1.xpose.msra.mxu0 %v1072
        %1074 = vmatprep.subr.mxu0 0.0
        %v1075 = vand.u32 %v296, 4294901760
        %v1076 = vsub.f32 %v296, %v1075
        %v1077 = vand.u32 %v1076, 4294901760
        %1078 = vmatpush1.xpose.msra.mxu0 %v1077
        %1079 = vmatprep.subr.mxu0 0.0
        %v1080 = vand.u32 %v299, 4294901760
        %v1081 = vsub.f32 %v299, %v1080
        %v1082 = vand.u32 %v1081, 4294901760
        %1083 = vmatpush1.xpose.msra.mxu0 %v1082
        %1084 = vmatprep.subr.mxu0 0.0
        %v1085 = vand.u32 %v302, 4294901760
        %v1086 = vsub.f32 %v302, %v1085
        %v1087 = vand.u32 %v1086, 4294901760
        %1088 = vmatpush1.xpose.msra.mxu0 %v1087
        %1089 = vmatprep.subr.mxu0 0.0
        %v1090 = vand.u32 %v305, 4294901760
        %v1091 = vsub.f32 %v305, %v1090
        %v1092 = vand.u32 %v1091, 4294901760
        %1093 = vmatpush1.xpose.msra.mxu0 %v1092
        %1094 = vmatprep.subr.mxu0 0.0
        %v1095 = vand.u32 %v308, 4294901760
        %v1096 = vsub.f32 %v308, %v1095
        %v1097 = vand.u32 %v1096, 4294901760
        %1098 = vmatpush1.xpose.msra.mxu0 %v1097
        %1099 = vmatprep.subr.mxu0 0.0
        %v1100 = vand.u32 %v311, 4294901760
        %v1101 = vsub.f32 %v311, %v1100
        %v1102 = vand.u32 %v1101, 4294901760
        %1103 = vmatpush1.xpose.msra.mxu0 %v1102
        %1104 = vmatprep.subr.mxu0 0.0
        %v1105 = vand.u32 %v314, 4294901760
        %v1106 = vsub.f32 %v314, %v1105
        %v1107 = vand.u32 %v1106, 4294901760
        %1108 = vmatpush1.xpose.msra.mxu0 %v1107
        %1109 = vmatprep.subr.mxu0 0.0
        %v1110 = vand.u32 %v317, 4294901760
        %v1111 = vsub.f32 %v317, %v1110
        %v1112 = vand.u32 %v1111, 4294901760
        %1113 = vmatpush1.xpose.msra.mxu0 %v1112
        %1114 = vmatprep.subr.mxu0 0.0
        %v1115 = vand.u32 %v320, 4294901760
        %v1116 = vsub.f32 %v320, %v1115
        %v1117 = vand.u32 %v1116, 4294901760
        %1118 = vmatpush1.xpose.msra.mxu0 %v1117
        %1119 = vmatprep.subr.mxu0 0.0
        %v1120 = vand.u32 %v323, 4294901760
        %v1121 = vsub.f32 %v323, %v1120
        %v1122 = vand.u32 %v1121, 4294901760
        %1123 = vmatpush1.xpose.msra.mxu0 %v1122
        %1124 = vmatprep.subr.mxu0 0.0
        %v1125 = vand.u32 %v326, 4294901760
        %v1126 = vsub.f32 %v326, %v1125
        %v1127 = vand.u32 %v1126, 4294901760
        %1128 = vmatpush1.xpose.msra.mxu0 %v1127
        %1129 = vmatprep.subr.mxu0 0.0
        %v1130 = vand.u32 %v329, 4294901760
        %v1131 = vsub.f32 %v329, %v1130
        %v1132 = vand.u32 %v1131, 4294901760
        %1133 = vmatpush1.xpose.msra.mxu0 %v1132
        %1134 = vmatprep.subr.mxu0 0.0
        %v1135 = vand.u32 %v332, 4294901760
        %v1136 = vsub.f32 %v332, %v1135
        %v1137 = vand.u32 %v1136, 4294901760
        %1138 = vmatpush1.xpose.msra.mxu0 %v1137
        %1139 = vmatprep.subr.mxu0 0.0
        %v1140 = vand.u32 %v335, 4294901760
        %v1141 = vsub.f32 %v335, %v1140
        %v1142 = vand.u32 %v1141, 4294901760
        %1143 = vmatpush1.xpose.msra.mxu0 %v1142
        %1144 = vmatprep.subr.mxu0 0.0
        %v1145 = vand.u32 %v338, 4294901760
        %v1146 = vsub.f32 %v338, %v1145
        %v1147 = vand.u32 %v1146, 4294901760
        %1148 = vmatpush1.xpose.msra.mxu0 %v1147
        %1149 = vmatprep.subr.mxu0 0.0
        %v1150 = vand.u32 %v341, 4294901760
        %v1151 = vsub.f32 %v341, %v1150
        %v1152 = vand.u32 %v1151, 4294901760
        %1153 = vmatpush1.xpose.msra.mxu0 %v1152
        %1154 = vmatprep.subr.mxu0 0.0
        %v1155 = vand.u32 %v344, 4294901760
        %v1156 = vsub.f32 %v344, %v1155
        %v1157 = vand.u32 %v1156, 4294901760
        %1158 = vmatpush1.xpose.msra.mxu0 %v1157
        %1159 = vmatprep.subr.mxu0 0.0
        %v1160 = vand.u32 %v347, 4294901760
        %v1161 = vsub.f32 %v347, %v1160
        %v1162 = vand.u32 %v1161, 4294901760
        %1163 = vmatpush1.xpose.msra.mxu0 %v1162
        %1164 = vmatprep.subr.mxu0 0.0
        %v1165 = vand.u32 %v350, 4294901760
        %v1166 = vsub.f32 %v350, %v1165
        %v1167 = vand.u32 %v1166, 4294901760
        %1168 = vmatpush1.xpose.msra.mxu0 %v1167
        %1169 = vmatprep.subr.mxu0 0.0
        %v1170 = vand.u32 %v353, 4294901760
        %v1171 = vsub.f32 %v353, %v1170
        %v1172 = vand.u32 %v1171, 4294901760
        %1173 = vmatpush1.xpose.msra.mxu0 %v1172
        %1174 = vmatprep.subr.mxu0 0.0
        %v1175 = vand.u32 %v356, 4294901760
        %v1176 = vsub.f32 %v356, %v1175
        %v1177 = vand.u32 %v1176, 4294901760
        %1178 = vmatpush1.xpose.msra.mxu0 %v1177
        %1179 = vmatprep.subr.mxu0 0.0
        %v1180 = vand.u32 %v359, 4294901760
        %v1181 = vsub.f32 %v359, %v1180
        %v1182 = vand.u32 %v1181, 4294901760
        %1183 = vmatpush1.xpose.msra.mxu0 %v1182
        %1184 = vmatprep.subr.mxu0 0.0
        %v1185 = vand.u32 %v362, 4294901760
        %v1186 = vsub.f32 %v362, %v1185
        %v1187 = vand.u32 %v1186, 4294901760
        %1188 = vmatpush1.xpose.msra.mxu0 %v1187
        %1189 = vmatprep.subr.mxu0 0.0
        %v1190 = vand.u32 %v365, 4294901760
        %v1191 = vsub.f32 %v365, %v1190
        %v1192 = vand.u32 %v1191, 4294901760
        %1193 = vmatpush1.xpose.msra.mxu0 %v1192
        %1194 = vmatprep.subr.mxu0 0.0
        %v1195 = vand.u32 %v368, 4294901760
        %v1196 = vsub.f32 %v368, %v1195
        %v1197 = vand.u32 %v1196, 4294901760
        %1198 = vmatpush1.xpose.msra.mxu0 %v1197
        %1199 = vmatprep.subr.mxu0 0.0
        %v1200 = vand.u32 %v371, 4294901760
        %v1201 = vsub.f32 %v371, %v1200
        %v1202 = vand.u32 %v1201, 4294901760
        %1203 = vmatpush1.xpose.msra.mxu0 %v1202
        %1204 = vmatprep.subr.mxu0 0.0
        %v1205 = vand.u32 %v374, 4294901760
        %v1206 = vsub.f32 %v374, %v1205
        %v1207 = vand.u32 %v1206, 4294901760
        %1208 = vmatpush1.xpose.msra.mxu0 %v1207
        %1209 = vmatprep.subr.mxu0 0.0
        %v1210 = vand.u32 %v377, 4294901760
        %v1211 = vsub.f32 %v377, %v1210
        %v1212 = vand.u32 %v1211, 4294901760
        %1213 = vmatpush1.xpose.msra.mxu0 %v1212
        %1214 = vmatprep.subr.mxu0 0.0
        %v1215 = vand.u32 %v380, 4294901760
        %v1216 = vsub.f32 %v380, %v1215
        %v1217 = vand.u32 %v1216, 4294901760
        %1218 = vmatpush1.xpose.msra.mxu0 %v1217
        %1219 = vmatprep.subr.mxu0 0.0
        %v1220 = vand.u32 %v383, 4294901760
        %v1221 = vsub.f32 %v383, %v1220
        %v1222 = vand.u32 %v1221, 4294901760
        %1223 = vmatpush1.xpose.msra.mxu0 %v1222
        %1224 = vmatprep.mubr.f32.mxu0 0.0
        %v1225 = vand.u32 %v287, 4294901760
        %1226 = vmatmul.mubr.f32.gmra.mrb[0].mxu0 %v1225
        %v1227 = vpop.f32.mrb[0].mxu0
        %v1228 = vadd.f32 %v1060, %v1227
        %v1229 = vpop.f32.mrb[0].mxu0
        %v1230 = vadd.f32 %v1062, %v1229
        %1231 = vdwg.mxu0
        %1232 = vmatprep.subr.mxu0 0.0
        %v1233 = vand.u32 %v290, 4294901760
        %1234 = vmatpush1.xpose.msra.mxu0 %v1233
        %1235 = vmatprep.subr.mxu0 0.0
        %v1236 = vand.u32 %v293, 4294901760
        %1237 = vmatpush1.xpose.msra.mxu0 %v1236
        %1238 = vmatprep.subr.mxu0 0.0
        %v1239 = vand.u32 %v296, 4294901760
        %1240 = vmatpush1.xpose.msra.mxu0 %v1239
        %1241 = vmatprep.subr.mxu0 0.0
        %v1242 = vand.u32 %v299, 4294901760
        %1243 = vmatpush1.xpose.msra.mxu0 %v1242
        %1244 = vmatprep.subr.mxu0 0.0
        %v1245 = vand.u32 %v302, 4294901760
        %1246 = vmatpush1.xpose.msra.mxu0 %v1245
        %1247 = vmatprep.subr.mxu0 0.0
        %v1248 = vand.u32 %v305, 4294901760
        %1249 = vmatpush1.xpose.msra.mxu0 %v1248
        %1250 = vmatprep.subr.mxu0 0.0
        %v1251 = vand.u32 %v308, 4294901760
        %1252 = vmatpush1.xpose.msra.mxu0 %v1251
        %1253 = vmatprep.subr.mxu0 0.0
        %v1254 = vand.u32 %v311, 4294901760
        %1255 = vmatpush1.xpose.msra.mxu0 %v1254
        %1256 = vmatprep.subr.mxu0 0.0
        %v1257 = vand.u32 %v314, 4294901760
        %1258 = vmatpush1.xpose.msra.mxu0 %v1257
        %1259 = vmatprep.subr.mxu0 0.0
        %v1260 = vand.u32 %v317, 4294901760
        %1261 = vmatpush1.xpose.msra.mxu0 %v1260
        %1262 = vmatprep.subr.mxu0 0.0
        %v1263 = vand.u32 %v320, 4294901760
        %1264 = vmatpush1.xpose.msra.mxu0 %v1263
        %1265 = vmatprep.subr.mxu0 0.0
        %v1266 = vand.u32 %v323, 4294901760
        %1267 = vmatpush1.xpose.msra.mxu0 %v1266
        %1268 = vmatprep.subr.mxu0 0.0
        %v1269 = vand.u32 %v326, 4294901760
        %1270 = vmatpush1.xpose.msra.mxu0 %v1269
        %1271 = vmatprep.subr.mxu0 0.0
        %v1272 = vand.u32 %v329, 4294901760
        %1273 = vmatpush1.xpose.msra.mxu0 %v1272
        %1274 = vmatprep.subr.mxu0 0.0
        %v1275 = vand.u32 %v332, 4294901760
        %1276 = vmatpush1.xpose.msra.mxu0 %v1275
        %1277 = vmatprep.subr.mxu0 0.0
        %v1278 = vand.u32 %v335, 4294901760
        %1279 = vmatpush1.xpose.msra.mxu0 %v1278
        %1280 = vmatprep.subr.mxu0 0.0
        %v1281 = vand.u32 %v338, 4294901760
        %1282 = vmatpush1.xpose.msra.mxu0 %v1281
        %1283 = vmatprep.subr.mxu0 0.0
        %v1284 = vand.u32 %v341, 4294901760
        %1285 = vmatpush1.xpose.msra.mxu0 %v1284
        %1286 = vmatprep.subr.mxu0 0.0
        %v1287 = vand.u32 %v344, 4294901760
        %1288 = vmatpush1.xpose.msra.mxu0 %v1287
        %1289 = vmatprep.subr.mxu0 0.0
        %v1290 = vand.u32 %v347, 4294901760
        %1291 = vmatpush1.xpose.msra.mxu0 %v1290
        %1292 = vmatprep.subr.mxu0 0.0
        %v1293 = vand.u32 %v350, 4294901760
        %1294 = vmatpush1.xpose.msra.mxu0 %v1293
        %1295 = vmatprep.subr.mxu0 0.0
        %v1296 = vand.u32 %v353, 4294901760
        %1297 = vmatpush1.xpose.msra.mxu0 %v1296
        %1298 = vmatprep.subr.mxu0 0.0
        %v1299 = vand.u32 %v356, 4294901760
        %1300 = vmatpush1.xpose.msra.mxu0 %v1299
        %1301 = vmatprep.subr.mxu0 0.0
        %v1302 = vand.u32 %v359, 4294901760
        %1303 = vmatpush1.xpose.msra.mxu0 %v1302
        %1304 = vmatprep.subr.mxu0 0.0
        %v1305 = vand.u32 %v362, 4294901760
        %1306 = vmatpush1.xpose.msra.mxu0 %v1305
        %1307 = vmatprep.subr.mxu0 0.0
        %v1308 = vand.u32 %v365, 4294901760
        %1309 = vmatpush1.xpose.msra.mxu0 %v1308
        %1310 = vmatprep.subr.mxu0 0.0
        %v1311 = vand.u32 %v368, 4294901760
        %1312 = vmatpush1.xpose.msra.mxu0 %v1311
        %1313 = vmatprep.subr.mxu0 0.0
        %v1314 = vand.u32 %v371, 4294901760
        %1315 = vmatpush1.xpose.msra.mxu0 %v1314
        %1316 = vmatprep.subr.mxu0 0.0
        %v1317 = vand.u32 %v374, 4294901760
        %1318 = vmatpush1.xpose.msra.mxu0 %v1317
        %1319 = vmatprep.subr.mxu0 0.0
        %v1320 = vand.u32 %v377, 4294901760
        %1321 = vmatpush1.xpose.msra.mxu0 %v1320
        %1322 = vmatprep.subr.mxu0 0.0
        %v1323 = vand.u32 %v380, 4294901760
        %1324 = vmatpush1.xpose.msra.mxu0 %v1323
        %1325 = vmatprep.subr.mxu0 0.0
        %v1326 = vand.u32 %v383, 4294901760
        %1327 = vmatpush1.xpose.msra.mxu0 %v1326
        %1328 = vmatprep.mubr.f32.mxu0 0.0
        %v1329 = vand.u32 %v287, 4294901760
        %1330 = vmatmul.mubr.f32.gmra.mrb[0].mxu0 %v1329
        %v1331 = vpop.f32.mrb[0].mxu0
        %v1332 = vadd.f32 %v1228, %v1331
        %v1333 = vpop.f32.mrb[0].mxu0
        %v1334 = vadd.f32 %v1230, %v1333
        %1335 = vdwg.mxu0
        %1336 = vmatprep.subr.mxu0 0.0
        %v1337 = vand.u32 %v386, 4294901760
        %1338 = vmatpush1.xpose.msra.mxu0 %v1337
        %1339 = vmatprep.subr.mxu0 0.0
        %v1340 = vand.u32 %v389, 4294901760
        %1341 = vmatpush1.xpose.msra.mxu0 %v1340
        %1342 = vmatprep.subr.mxu0 0.0
        %v1343 = vand.u32 %v392, 4294901760
        %1344 = vmatpush1.xpose.msra.mxu0 %v1343
        %1345 = vmatprep.subr.mxu0 0.0
        %v1346 = vand.u32 %v395, 4294901760
        %1347 = vmatpush1.xpose.msra.mxu0 %v1346
        %1348 = vmatprep.subr.mxu0 0.0
        %v1349 = vand.u32 %v398, 4294901760
        %1350 = vmatpush1.xpose.msra.mxu0 %v1349
        %1351 = vmatprep.subr.mxu0 0.0
        %v1352 = vand.u32 %v401, 4294901760
        %1353 = vmatpush1.xpose.msra.mxu0 %v1352
        %1354 = vmatprep.subr.mxu0 0.0
        %v1355 = vand.u32 %v404, 4294901760
        %1356 = vmatpush1.xpose.msra.mxu0 %v1355
        %1357 = vmatprep.subr.mxu0 0.0
        %v1358 = vand.u32 %v407, 4294901760
        %1359 = vmatpush1.xpose.msra.mxu0 %v1358
        %1360 = vmatprep.subr.mxu0 0.0
        %v1361 = vand.u32 %v410, 4294901760
        %1362 = vmatpush1.xpose.msra.mxu0 %v1361
        %1363 = vmatprep.subr.mxu0 0.0
        %v1364 = vand.u32 %v413, 4294901760
        %1365 = vmatpush1.xpose.msra.mxu0 %v1364
        %1366 = vmatprep.subr.mxu0 0.0
        %v1367 = vand.u32 %v416, 4294901760
        %1368 = vmatpush1.xpose.msra.mxu0 %v1367
        %1369 = vmatprep.subr.mxu0 0.0
        %v1370 = vand.u32 %v419, 4294901760
        %1371 = vmatpush1.xpose.msra.mxu0 %v1370
        %1372 = vmatprep.subr.mxu0 0.0
        %v1373 = vand.u32 %v422, 4294901760
        %1374 = vmatpush1.xpose.msra.mxu0 %v1373
        %1375 = vmatprep.subr.mxu0 0.0
        %v1376 = vand.u32 %v425, 4294901760
        %1377 = vmatpush1.xpose.msra.mxu0 %v1376
        %1378 = vmatprep.subr.mxu0 0.0
        %v1379 = vand.u32 %v428, 4294901760
        %1380 = vmatpush1.xpose.msra.mxu0 %v1379
        %1381 = vmatprep.subr.mxu0 0.0
        %v1382 = vand.u32 %v431, 4294901760
        %1383 = vmatpush1.xpose.msra.mxu0 %v1382
        %1384 = vmatprep.subr.mxu0 0.0
        %v1385 = vand.u32 %v434, 4294901760
        %1386 = vmatpush1.xpose.msra.mxu0 %v1385
        %1387 = vmatprep.subr.mxu0 0.0
        %v1388 = vand.u32 %v437, 4294901760
        %1389 = vmatpush1.xpose.msra.mxu0 %v1388
        %1390 = vmatprep.subr.mxu0 0.0
        %v1391 = vand.u32 %v440, 4294901760
        %1392 = vmatpush1.xpose.msra.mxu0 %v1391
        %1393 = vmatprep.subr.mxu0 0.0
        %v1394 = vand.u32 %v443, 4294901760
        %1395 = vmatpush1.xpose.msra.mxu0 %v1394
        %1396 = vmatprep.subr.mxu0 0.0
        %v1397 = vand.u32 %v446, 4294901760
        %1398 = vmatpush1.xpose.msra.mxu0 %v1397
        %1399 = vmatprep.subr.mxu0 0.0
        %v1400 = vand.u32 %v449, 4294901760
        %1401 = vmatpush1.xpose.msra.mxu0 %v1400
        %1402 = vmatprep.subr.mxu0 0.0
        %v1403 = vand.u32 %v452, 4294901760
        %1404 = vmatpush1.xpose.msra.mxu0 %v1403
        %1405 = vmatprep.subr.mxu0 0.0
        %v1406 = vand.u32 %v455, 4294901760
        %1407 = vmatpush1.xpose.msra.mxu0 %v1406
        %1408 = vmatprep.subr.mxu0 0.0
        %v1409 = vand.u32 %v458, 4294901760
        %1410 = vmatpush1.xpose.msra.mxu0 %v1409
        %1411 = vmatprep.subr.mxu0 0.0
        %v1412 = vand.u32 %v461, 4294901760
        %1413 = vmatpush1.xpose.msra.mxu0 %v1412
        %1414 = vmatprep.subr.mxu0 0.0
        %v1415 = vand.u32 %v464, 4294901760
        %1416 = vmatpush1.xpose.msra.mxu0 %v1415
        %1417 = vmatprep.subr.mxu0 0.0
        %v1418 = vand.u32 %v467, 4294901760
        %1419 = vmatpush1.xpose.msra.mxu0 %v1418
        %1420 = vmatprep.subr.mxu0 0.0
        %v1421 = vand.u32 %v470, 4294901760
        %1422 = vmatpush1.xpose.msra.mxu0 %v1421
        %1423 = vmatprep.subr.mxu0 0.0
        %v1424 = vand.u32 %v473, 4294901760
        %1425 = vmatpush1.xpose.msra.mxu0 %v1424
        %1426 = vmatprep.subr.mxu0 0.0
        %v1427 = vand.u32 %v476, 4294901760
        %1428 = vmatpush1.xpose.msra.mxu0 %v1427
        %1429 = vmatprep.subr.mxu0 0.0
        %v1430 = vand.u32 %v479, 4294901760
        %1431 = vmatpush1.xpose.msra.mxu0 %v1430
        %1432 = vmatprep.mubr.f32.mxu0 0.0
        %v1433 = vand.u32 %v287, 4294901760
        %v1434 = vsub.f32 %v287, %v1433
        %v1435 = vand.u32 %v1434, 4294901760
        %v1436 = vsub.f32 %v1434, %v1435
        %v1437 = vand.u32 %v1436, 4294901760
        %1438 = vmatmul.mubr.f32.gmra.mrb[0].mxu0 %v1437
        %v1439 = vpop.f32.mrb[0].mxu0
        %v1440 = vadd.f32 0.0, %v1439
        %v1441 = vpop.f32.mrb[0].mxu0
        %v1442 = vadd.f32 0.0, %v1441
        %1443 = vdwg.mxu0
        %1444 = vmatprep.subr.mxu0 0.0
        %v1445 = vand.u32 %v386, 4294901760
        %v1446 = vsub.f32 %v386, %v1445
        %v1447 = vand.u32 %v1446, 4294901760
        %v1448 = vsub.f32 %v1446, %v1447
        %v1449 = vand.u32 %v1448, 4294901760
        %1450 = vmatpush1.xpose.msra.mxu0 %v1449
        %1451 = vmatprep.subr.mxu0 0.0
        %v1452 = vand.u32 %v389, 4294901760
        %v1453 = vsub.f32 %v389, %v1452
        %v1454 = vand.u32 %v1453, 4294901760
        %v1455 = vsub.f32 %v1453, %v1454
        %v1456 = vand.u32 %v1455, 4294901760
        %1457 = vmatpush1.xpose.msra.mxu0 %v1456
        %1458 = vmatprep.subr.mxu0 0.0
        %v1459 = vand.u32 %v392, 4294901760
        %v1460 = vsub.f32 %v392, %v1459
        %v1461 = vand.u32 %v1460, 4294901760
        %v1462 = vsub.f32 %v1460, %v1461
        %v1463 = vand.u32 %v1462, 4294901760
        %1464 = vmatpush1.xpose.msra.mxu0 %v1463
        %1465 = vmatprep.subr.mxu0 0.0
        %v1466 = vand.u32 %v395, 4294901760
        %v1467 = vsub.f32 %v395, %v1466
        %v1468 = vand.u32 %v1467, 4294901760
        %v1469 = vsub.f32 %v1467, %v1468
        %v1470 = vand.u32 %v1469, 4294901760
        %1471 = vmatpush1.xpose.msra.mxu0 %v1470
        %1472 = vmatprep.subr.mxu0 0.0
        %v1473 = vand.u32 %v398, 4294901760
        %v1474 = vsub.f32 %v398, %v1473
        %v1475 = vand.u32 %v1474, 4294901760
        %v1476 = vsub.f32 %v1474, %v1475
        %v1477 = vand.u32 %v1476, 4294901760
        %1478 = vmatpush1.xpose.msra.mxu0 %v1477
        %1479 = vmatprep.subr.mxu0 0.0
        %v1480 = vand.u32 %v401, 4294901760
        %v1481 = vsub.f32 %v401, %v1480
        %v1482 = vand.u32 %v1481, 4294901760
        %v1483 = vsub.f32 %v1481, %v1482
        %v1484 = vand.u32 %v1483, 4294901760
        %1485 = vmatpush1.xpose.msra.mxu0 %v1484
        %1486 = vmatprep.subr.mxu0 0.0
        %v1487 = vand.u32 %v404, 4294901760
        %v1488 = vsub.f32 %v404, %v1487
        %v1489 = vand.u32 %v1488, 4294901760
        %v1490 = vsub.f32 %v1488, %v1489
        %v1491 = vand.u32 %v1490, 4294901760
        %1492 = vmatpush1.xpose.msra.mxu0 %v1491
        %1493 = vmatprep.subr.mxu0 0.0
        %v1494 = vand.u32 %v407, 4294901760
        %v1495 = vsub.f32 %v407, %v1494
        %v1496 = vand.u32 %v1495, 4294901760
        %v1497 = vsub.f32 %v1495, %v1496
        %v1498 = vand.u32 %v1497, 4294901760
        %1499 = vmatpush1.xpose.msra.mxu0 %v1498
        %1500 = vmatprep.subr.mxu0 0.0
        %v1501 = vand.u32 %v410, 4294901760
        %v1502 = vsub.f32 %v410, %v1501
        %v1503 = vand.u32 %v1502, 4294901760
        %v1504 = vsub.f32 %v1502, %v1503
        %v1505 = vand.u32 %v1504, 4294901760
        %1506 = vmatpush1.xpose.msra.mxu0 %v1505
        %1507 = vmatprep.subr.mxu0 0.0
        %v1508 = vand.u32 %v413, 4294901760
        %v1509 = vsub.f32 %v413, %v1508
        %v1510 = vand.u32 %v1509, 4294901760
        %v1511 = vsub.f32 %v1509, %v1510
        %v1512 = vand.u32 %v1511, 4294901760
        %1513 = vmatpush1.xpose.msra.mxu0 %v1512
        %1514 = vmatprep.subr.mxu0 0.0
        %v1515 = vand.u32 %v416, 4294901760
        %v1516 = vsub.f32 %v416, %v1515
        %v1517 = vand.u32 %v1516, 4294901760
        %v1518 = vsub.f32 %v1516, %v1517
        %v1519 = vand.u32 %v1518, 4294901760
        %1520 = vmatpush1.xpose.msra.mxu0 %v1519
        %1521 = vmatprep.subr.mxu0 0.0
        %v1522 = vand.u32 %v419, 4294901760
        %v1523 = vsub.f32 %v419, %v1522
        %v1524 = vand.u32 %v1523, 4294901760
        %v1525 = vsub.f32 %v1523, %v1524
        %v1526 = vand.u32 %v1525, 4294901760
        %1527 = vmatpush1.xpose.msra.mxu0 %v1526
        %1528 = vmatprep.subr.mxu0 0.0
        %v1529 = vand.u32 %v422, 4294901760
        %v1530 = vsub.f32 %v422, %v1529
        %v1531 = vand.u32 %v1530, 4294901760
        %v1532 = vsub.f32 %v1530, %v1531
        %v1533 = vand.u32 %v1532, 4294901760
        %1534 = vmatpush1.xpose.msra.mxu0 %v1533
        %1535 = vmatprep.subr.mxu0 0.0
        %v1536 = vand.u32 %v425, 4294901760
        %v1537 = vsub.f32 %v425, %v1536
        %v1538 = vand.u32 %v1537, 4294901760
        %v1539 = vsub.f32 %v1537, %v1538
        %v1540 = vand.u32 %v1539, 4294901760
        %1541 = vmatpush1.xpose.msra.mxu0 %v1540
        %1542 = vmatprep.subr.mxu0 0.0
        %v1543 = vand.u32 %v428, 4294901760
        %v1544 = vsub.f32 %v428, %v1543
        %v1545 = vand.u32 %v1544, 4294901760
        %v1546 = vsub.f32 %v1544, %v1545
        %v1547 = vand.u32 %v1546, 4294901760
        %1548 = vmatpush1.xpose.msra.mxu0 %v1547
        %1549 = vmatprep.subr.mxu0 0.0
        %v1550 = vand.u32 %v431, 4294901760
        %v1551 = vsub.f32 %v431, %v1550
        %v1552 = vand.u32 %v1551, 4294901760
        %v1553 = vsub.f32 %v1551, %v1552
        %v1554 = vand.u32 %v1553, 4294901760
        %1555 = vmatpush1.xpose.msra.mxu0 %v1554
        %1556 = vmatprep.subr.mxu0 0.0
        %v1557 = vand.u32 %v434, 4294901760
        %v1558 = vsub.f32 %v434, %v1557
        %v1559 = vand.u32 %v1558, 4294901760
        %v1560 = vsub.f32 %v1558, %v1559
        %v1561 = vand.u32 %v1560, 4294901760
        %1562 = vmatpush1.xpose.msra.mxu0 %v1561
        %1563 = vmatprep.subr.mxu0 0.0
        %v1564 = vand.u32 %v437, 4294901760
        %v1565 = vsub.f32 %v437, %v1564
        %v1566 = vand.u32 %v1565, 4294901760
        %v1567 = vsub.f32 %v1565, %v1566
        %v1568 = vand.u32 %v1567, 4294901760
        %1569 = vmatpush1.xpose.msra.mxu0 %v1568
        %1570 = vmatprep.subr.mxu0 0.0
        %v1571 = vand.u32 %v440, 4294901760
        %v1572 = vsub.f32 %v440, %v1571
        %v1573 = vand.u32 %v1572, 4294901760
        %v1574 = vsub.f32 %v1572, %v1573
        %v1575 = vand.u32 %v1574, 4294901760
        %1576 = vmatpush1.xpose.msra.mxu0 %v1575
        %1577 = vmatprep.subr.mxu0 0.0
        %v1578 = vand.u32 %v443, 4294901760
        %v1579 = vsub.f32 %v443, %v1578
        %v1580 = vand.u32 %v1579, 4294901760
        %v1581 = vsub.f32 %v1579, %v1580
        %v1582 = vand.u32 %v1581, 4294901760
        %1583 = vmatpush1.xpose.msra.mxu0 %v1582
        %1584 = vmatprep.subr.mxu0 0.0
        %v1585 = vand.u32 %v446, 4294901760
        %v1586 = vsub.f32 %v446, %v1585
        %v1587 = vand.u32 %v1586, 4294901760
        %v1588 = vsub.f32 %v1586, %v1587
        %v1589 = vand.u32 %v1588, 4294901760
        %1590 = vmatpush1.xpose.msra.mxu0 %v1589
        %1591 = vmatprep.subr.mxu0 0.0
        %v1592 = vand.u32 %v449, 4294901760
        %v1593 = vsub.f32 %v449, %v1592
        %v1594 = vand.u32 %v1593, 4294901760
        %v1595 = vsub.f32 %v1593, %v1594
        %v1596 = vand.u32 %v1595, 4294901760
        %1597 = vmatpush1.xpose.msra.mxu0 %v1596
        %1598 = vmatprep.subr.mxu0 0.0
        %v1599 = vand.u32 %v452, 4294901760
        %v1600 = vsub.f32 %v452, %v1599
        %v1601 = vand.u32 %v1600, 4294901760
        %v1602 = vsub.f32 %v1600, %v1601
        %v1603 = vand.u32 %v1602, 4294901760
        %1604 = vmatpush1.xpose.msra.mxu0 %v1603
        %1605 = vmatprep.subr.mxu0 0.0
        %v1606 = vand.u32 %v455, 4294901760
        %v1607 = vsub.f32 %v455, %v1606
        %v1608 = vand.u32 %v1607, 4294901760
        %v1609 = vsub.f32 %v1607, %v1608
        %v1610 = vand.u32 %v1609, 4294901760
        %1611 = vmatpush1.xpose.msra.mxu0 %v1610
        %1612 = vmatprep.subr.mxu0 0.0
        %v1613 = vand.u32 %v458, 4294901760
        %v1614 = vsub.f32 %v458, %v1613
        %v1615 = vand.u32 %v1614, 4294901760
        %v1616 = vsub.f32 %v1614, %v1615
        %v1617 = vand.u32 %v1616, 4294901760
        %1618 = vmatpush1.xpose.msra.mxu0 %v1617
        %1619 = vmatprep.subr.mxu0 0.0
        %v1620 = vand.u32 %v461, 4294901760
        %v1621 = vsub.f32 %v461, %v1620
        %v1622 = vand.u32 %v1621, 4294901760
        %v1623 = vsub.f32 %v1621, %v1622
        %v1624 = vand.u32 %v1623, 4294901760
        %1625 = vmatpush1.xpose.msra.mxu0 %v1624
        %1626 = vmatprep.subr.mxu0 0.0
        %v1627 = vand.u32 %v464, 4294901760
        %v1628 = vsub.f32 %v464, %v1627
        %v1629 = vand.u32 %v1628, 4294901760
        %v1630 = vsub.f32 %v1628, %v1629
        %v1631 = vand.u32 %v1630, 4294901760
        %1632 = vmatpush1.xpose.msra.mxu0 %v1631
        %1633 = vmatprep.subr.mxu0 0.0
        %v1634 = vand.u32 %v467, 4294901760
        %v1635 = vsub.f32 %v467, %v1634
        %v1636 = vand.u32 %v1635, 4294901760
        %v1637 = vsub.f32 %v1635, %v1636
        %v1638 = vand.u32 %v1637, 4294901760
        %1639 = vmatpush1.xpose.msra.mxu0 %v1638
        %1640 = vmatprep.subr.mxu0 0.0
        %v1641 = vand.u32 %v470, 4294901760
        %v1642 = vsub.f32 %v470, %v1641
        %v1643 = vand.u32 %v1642, 4294901760
        %v1644 = vsub.f32 %v1642, %v1643
        %v1645 = vand.u32 %v1644, 4294901760
        %1646 = vmatpush1.xpose.msra.mxu0 %v1645
        %1647 = vmatprep.subr.mxu0 0.0
        %v1648 = vand.u32 %v473, 4294901760
        %v1649 = vsub.f32 %v473, %v1648
        %v1650 = vand.u32 %v1649, 4294901760
        %v1651 = vsub.f32 %v1649, %v1650
        %v1652 = vand.u32 %v1651, 4294901760
        %1653 = vmatpush1.xpose.msra.mxu0 %v1652
        %1654 = vmatprep.subr.mxu0 0.0
        %v1655 = vand.u32 %v476, 4294901760
        %v1656 = vsub.f32 %v476, %v1655
        %v1657 = vand.u32 %v1656, 4294901760
        %v1658 = vsub.f32 %v1656, %v1657
        %v1659 = vand.u32 %v1658, 4294901760
        %1660 = vmatpush1.xpose.msra.mxu0 %v1659
        %1661 = vmatprep.subr.mxu0 0.0
        %v1662 = vand.u32 %v479, 4294901760
        %v1663 = vsub.f32 %v479, %v1662
        %v1664 = vand.u32 %v1663, 4294901760
        %v1665 = vsub.f32 %v1663, %v1664
        %v1666 = vand.u32 %v1665, 4294901760
        %1667 = vmatpush1.xpose.msra.mxu0 %v1666
        %1668 = vmatprep.mubr.f32.mxu0 0.0
        %v1669 = vand.u32 %v287, 4294901760
        %1670 = vmatmul.mubr.f32.gmra.mrb[0].mxu0 %v1669
        %v1671 = vpop.f32.mrb[0].mxu0
        %v1672 = vadd.f32 %v1440, %v1671
        %v1673 = vpop.f32.mrb[0].mxu0
        %v1674 = vadd.f32 %v1442, %v1673
        %1675 = vdwg.mxu0
        %1676 = vmatprep.subr.mxu0 0.0
        %v1677 = vand.u32 %v386, 4294901760
        %v1678 = vsub.f32 %v386, %v1677
        %1679 = vmatpush1.xpose.msra.mxu0 %v1678
        %1680 = vmatprep.subr.mxu0 0.0
        %v1681 = vand.u32 %v389, 4294901760
        %v1682 = vsub.f32 %v389, %v1681
        %1683 = vmatpush1.xpose.msra.mxu0 %v1682
        %1684 = vmatprep.subr.mxu0 0.0
        %v1685 = vand.u32 %v392, 4294901760
        %v1686 = vsub.f32 %v392, %v1685
        %1687 = vmatpush1.xpose.msra.mxu0 %v1686
        %1688 = vmatprep.subr.mxu0 0.0
        %v1689 = vand.u32 %v395, 4294901760
        %v1690 = vsub.f32 %v395, %v1689
        %1691 = vmatpush1.xpose.msra.mxu0 %v1690
        %1692 = vmatprep.subr.mxu0 0.0
        %v1693 = vand.u32 %v398, 4294901760
        %v1694 = vsub.f32 %v398, %v1693
        %1695 = vmatpush1.xpose.msra.mxu0 %v1694
        %1696 = vmatprep.subr.mxu0 0.0
        %v1697 = vand.u32 %v401, 4294901760
        %v1698 = vsub.f32 %v401, %v1697
        %1699 = vmatpush1.xpose.msra.mxu0 %v1698
        %1700 = vmatprep.subr.mxu0 0.0
        %v1701 = vand.u32 %v404, 4294901760
        %v1702 = vsub.f32 %v404, %v1701
        %1703 = vmatpush1.xpose.msra.mxu0 %v1702
        %1704 = vmatprep.subr.mxu0 0.0
        %v1705 = vand.u32 %v407, 4294901760
        %v1706 = vsub.f32 %v407, %v1705
        %1707 = vmatpush1.xpose.msra.mxu0 %v1706
        %1708 = vmatprep.subr.mxu0 0.0
        %v1709 = vand.u32 %v410, 4294901760
        %v1710 = vsub.f32 %v410, %v1709
        %1711 = vmatpush1.xpose.msra.mxu0 %v1710
        %1712 = vmatprep.subr.mxu0 0.0
        %v1713 = vand.u32 %v413, 4294901760
        %v1714 = vsub.f32 %v413, %v1713
        %1715 = vmatpush1.xpose.msra.mxu0 %v1714
        %1716 = vmatprep.subr.mxu0 0.0
        %v1717 = vand.u32 %v416, 4294901760
        %v1718 = vsub.f32 %v416, %v1717
        %1719 = vmatpush1.xpose.msra.mxu0 %v1718
        %1720 = vmatprep.subr.mxu0 0.0
        %v1721 = vand.u32 %v419, 4294901760
        %v1722 = vsub.f32 %v419, %v1721
        %1723 = vmatpush1.xpose.msra.mxu0 %v1722
        %1724 = vmatprep.subr.mxu0 0.0
        %v1725 = vand.u32 %v422, 4294901760
        %v1726 = vsub.f32 %v422, %v1725
        %1727 = vmatpush1.xpose.msra.mxu0 %v1726
        %1728 = vmatprep.subr.mxu0 0.0
        %v1729 = vand.u32 %v425, 4294901760
        %v1730 = vsub.f32 %v425, %v1729
        %1731 = vmatpush1.xpose.msra.mxu0 %v1730
        %1732 = vmatprep.subr.mxu0 0.0
        %v1733 = vand.u32 %v428, 4294901760
        %v1734 = vsub.f32 %v428, %v1733
        %1735 = vmatpush1.xpose.msra.mxu0 %v1734
        %1736 = vmatprep.subr.mxu0 0.0
        %v1737 = vand.u32 %v431, 4294901760
        %v1738 = vsub.f32 %v431, %v1737
        %1739 = vmatpush1.xpose.msra.mxu0 %v1738
        %1740 = vmatprep.subr.mxu0 0.0
        %v1741 = vand.u32 %v434, 4294901760
        %v1742 = vsub.f32 %v434, %v1741
        %1743 = vmatpush1.xpose.msra.mxu0 %v1742
        %1744 = vmatprep.subr.mxu0 0.0
        %v1745 = vand.u32 %v437, 4294901760
        %v1746 = vsub.f32 %v437, %v1745
        %1747 = vmatpush1.xpose.msra.mxu0 %v1746
        %1748 = vmatprep.subr.mxu0 0.0
        %v1749 = vand.u32 %v440, 4294901760
        %v1750 = vsub.f32 %v440, %v1749
        %1751 = vmatpush1.xpose.msra.mxu0 %v1750
        %1752 = vmatprep.subr.mxu0 0.0
        %v1753 = vand.u32 %v443, 4294901760
        %v1754 = vsub.f32 %v443, %v1753
        %1755 = vmatpush1.xpose.msra.mxu0 %v1754
        %1756 = vmatprep.subr.mxu0 0.0
        %v1757 = vand.u32 %v446, 4294901760
        %v1758 = vsub.f32 %v446, %v1757
        %1759 = vmatpush1.xpose.msra.mxu0 %v1758
        %1760 = vmatprep.subr.mxu0 0.0
        %v1761 = vand.u32 %v449, 4294901760
        %v1762 = vsub.f32 %v449, %v1761
        %1763 = vmatpush1.xpose.msra.mxu0 %v1762
        %1764 = vmatprep.subr.mxu0 0.0
        %v1765 = vand.u32 %v452, 4294901760
        %v1766 = vsub.f32 %v452, %v1765
        %1767 = vmatpush1.xpose.msra.mxu0 %v1766
        %1768 = vmatprep.subr.mxu0 0.0
        %v1769 = vand.u32 %v455, 4294901760
        %v1770 = vsub.f32 %v455, %v1769
        %1771 = vmatpush1.xpose.msra.mxu0 %v1770
        %1772 = vmatprep.subr.mxu0 0.0
        %v1773 = vand.u32 %v458, 4294901760
        %v1774 = vsub.f32 %v458, %v1773
        %1775 = vmatpush1.xpose.msra.mxu0 %v1774
        %1776 = vmatprep.subr.mxu0 0.0
        %v1777 = vand.u32 %v461, 4294901760
        %v1778 = vsub.f32 %v461, %v1777
        %1779 = vmatpush1.xpose.msra.mxu0 %v1778
        %1780 = vmatprep.subr.mxu0 0.0
        %v1781 = vand.u32 %v464, 4294901760
        %v1782 = vsub.f32 %v464, %v1781
        %1783 = vmatpush1.xpose.msra.mxu0 %v1782
        %1784 = vmatprep.subr.mxu0 0.0
        %v1785 = vand.u32 %v467, 4294901760
        %v1786 = vsub.f32 %v467, %v1785
        %1787 = vmatpush1.xpose.msra.mxu0 %v1786
        %1788 = vmatprep.subr.mxu0 0.0
        %v1789 = vand.u32 %v470, 4294901760
        %v1790 = vsub.f32 %v470, %v1789
        %1791 = vmatpush1.xpose.msra.mxu0 %v1790
        %1792 = vmatprep.subr.mxu0 0.0
        %v1793 = vand.u32 %v473, 4294901760
        %v1794 = vsub.f32 %v473, %v1793
        %1795 = vmatpush1.xpose.msra.mxu0 %v1794
        %1796 = vmatprep.subr.mxu0 0.0
        %v1797 = vand.u32 %v476, 4294901760
        %v1798 = vsub.f32 %v476, %v1797
        %1799 = vmatpush1.xpose.msra.mxu0 %v1798
        %1800 = vmatprep.subr.mxu0 0.0
        %v1801 = vand.u32 %v479, 4294901760
        %v1802 = vsub.f32 %v479, %v1801
        %1803 = vmatpush1.xpose.msra.mxu0 %v1802
        %1804 = vmatprep.mubr.f32.mxu0 0.0
        %v1805 = vand.u32 %v287, 4294901760
        %v1806 = vsub.f32 %v287, %v1805
        %1807 = vmatmul.mubr.f32.gmra.mrb[0].mxu0 %v1806
        %v1808 = vpop.f32.mrb[0].mxu0
        %v1809 = vadd.f32 %v1672, %v1808
        %v1810 = vpop.f32.mrb[0].mxu0
        %v1811 = vadd.f32 %v1674, %v1810
        %1812 = vdwg.mxu0
        %1813 = vmatprep.subr.mxu0 0.0
        %v1814 = vand.u32 %v386, 4294901760
        %1815 = vmatpush1.xpose.msra.mxu0 %v1814
        %1816 = vmatprep.subr.mxu0 0.0
        %v1817 = vand.u32 %v389, 4294901760
        %1818 = vmatpush1.xpose.msra.mxu0 %v1817
        %1819 = vmatprep.subr.mxu0 0.0
        %v1820 = vand.u32 %v392, 4294901760
        %1821 = vmatpush1.xpose.msra.mxu0 %v1820
        %1822 = vmatprep.subr.mxu0 0.0
        %v1823 = vand.u32 %v395, 4294901760
        %1824 = vmatpush1.xpose.msra.mxu0 %v1823
        %1825 = vmatprep.subr.mxu0 0.0
        %v1826 = vand.u32 %v398, 4294901760
        %1827 = vmatpush1.xpose.msra.mxu0 %v1826
        %1828 = vmatprep.subr.mxu0 0.0
        %v1829 = vand.u32 %v401, 4294901760
        %1830 = vmatpush1.xpose.msra.mxu0 %v1829
        %1831 = vmatprep.subr.mxu0 0.0
        %v1832 = vand.u32 %v404, 4294901760
        %1833 = vmatpush1.xpose.msra.mxu0 %v1832
        %1834 = vmatprep.subr.mxu0 0.0
        %v1835 = vand.u32 %v407, 4294901760
        %1836 = vmatpush1.xpose.msra.mxu0 %v1835
        %1837 = vmatprep.subr.mxu0 0.0
        %v1838 = vand.u32 %v410, 4294901760
        %1839 = vmatpush1.xpose.msra.mxu0 %v1838
        %1840 = vmatprep.subr.mxu0 0.0
        %v1841 = vand.u32 %v413, 4294901760
        %1842 = vmatpush1.xpose.msra.mxu0 %v1841
        %1843 = vmatprep.subr.mxu0 0.0
        %v1844 = vand.u32 %v416, 4294901760
        %1845 = vmatpush1.xpose.msra.mxu0 %v1844
        %1846 = vmatprep.subr.mxu0 0.0
        %v1847 = vand.u32 %v419, 4294901760
        %1848 = vmatpush1.xpose.msra.mxu0 %v1847
        %1849 = vmatprep.subr.mxu0 0.0
        %v1850 = vand.u32 %v422, 4294901760
        %1851 = vmatpush1.xpose.msra.mxu0 %v1850
        %1852 = vmatprep.subr.mxu0 0.0
        %v1853 = vand.u32 %v425, 4294901760
        %1854 = vmatpush1.xpose.msra.mxu0 %v1853
        %1855 = vmatprep.subr.mxu0 0.0
        %v1856 = vand.u32 %v428, 4294901760
        %1857 = vmatpush1.xpose.msra.mxu0 %v1856
        %1858 = vmatprep.subr.mxu0 0.0
        %v1859 = vand.u32 %v431, 4294901760
        %1860 = vmatpush1.xpose.msra.mxu0 %v1859
        %1861 = vmatprep.subr.mxu0 0.0
        %v1862 = vand.u32 %v434, 4294901760
        %1863 = vmatpush1.xpose.msra.mxu0 %v1862
        %1864 = vmatprep.subr.mxu0 0.0
        %v1865 = vand.u32 %v437, 4294901760
        %1866 = vmatpush1.xpose.msra.mxu0 %v1865
        %1867 = vmatprep.subr.mxu0 0.0
        %v1868 = vand.u32 %v440, 4294901760
        %1869 = vmatpush1.xpose.msra.mxu0 %v1868
        %1870 = vmatprep.subr.mxu0 0.0
        %v1871 = vand.u32 %v443, 4294901760
        %1872 = vmatpush1.xpose.msra.mxu0 %v1871
        %1873 = vmatprep.subr.mxu0 0.0
        %v1874 = vand.u32 %v446, 4294901760
        %1875 = vmatpush1.xpose.msra.mxu0 %v1874
        %1876 = vmatprep.subr.mxu0 0.0
        %v1877 = vand.u32 %v449, 4294901760
        %1878 = vmatpush1.xpose.msra.mxu0 %v1877
        %1879 = vmatprep.subr.mxu0 0.0
        %v1880 = vand.u32 %v452, 4294901760
        %1881 = vmatpush1.xpose.msra.mxu0 %v1880
        %1882 = vmatprep.subr.mxu0 0.0
        %v1883 = vand.u32 %v455, 4294901760
        %1884 = vmatpush1.xpose.msra.mxu0 %v1883
        %1885 = vmatprep.subr.mxu0 0.0
        %v1886 = vand.u32 %v458, 4294901760
        %1887 = vmatpush1.xpose.msra.mxu0 %v1886
        %1888 = vmatprep.subr.mxu0 0.0
        %v1889 = vand.u32 %v461, 4294901760
        %1890 = vmatpush1.xpose.msra.mxu0 %v1889
        %1891 = vmatprep.subr.mxu0 0.0
        %v1892 = vand.u32 %v464, 4294901760
        %1893 = vmatpush1.xpose.msra.mxu0 %v1892
        %1894 = vmatprep.subr.mxu0 0.0
        %v1895 = vand.u32 %v467, 4294901760
        %1896 = vmatpush1.xpose.msra.mxu0 %v1895
        %1897 = vmatprep.subr.mxu0 0.0
        %v1898 = vand.u32 %v470, 4294901760
        %1899 = vmatpush1.xpose.msra.mxu0 %v1898
        %1900 = vmatprep.subr.mxu0 0.0
        %v1901 = vand.u32 %v473, 4294901760
        %1902 = vmatpush1.xpose.msra.mxu0 %v1901
        %1903 = vmatprep.subr.mxu0 0.0
        %v1904 = vand.u32 %v476, 4294901760
        %1905 = vmatpush1.xpose.msra.mxu0 %v1904
        %1906 = vmatprep.subr.mxu0 0.0
        %v1907 = vand.u32 %v479, 4294901760
        %1908 = vmatpush1.xpose.msra.mxu0 %v1907
        %1909 = vmatprep.mubr.f32.mxu0 0.0
        %v1910 = vand.u32 %v287, 4294901760
        %v1911 = vsub.f32 %v287, %v1910
        %v1912 = vand.u32 %v1911, 4294901760
        %1913 = vmatmul.mubr.f32.gmra.mrb[0].mxu0 %v1912
        %v1914 = vpop.f32.mrb[0].mxu0
        %v1915 = vadd.f32 %v1809, %v1914
        %v1916 = vpop.f32.mrb[0].mxu0
        %v1917 = vadd.f32 %v1811, %v1916
        %1918 = vdwg.mxu0
        %1919 = vmatprep.subr.mxu0 0.0
        %v1920 = vand.u32 %v386, 4294901760
        %v1921 = vsub.f32 %v386, %v1920
        %v1922 = vand.u32 %v1921, 4294901760
        %1923 = vmatpush1.xpose.msra.mxu0 %v1922
        %1924 = vmatprep.subr.mxu0 0.0
        %v1925 = vand.u32 %v389, 4294901760
        %v1926 = vsub.f32 %v389, %v1925
        %v1927 = vand.u32 %v1926, 4294901760
        %1928 = vmatpush1.xpose.msra.mxu0 %v1927
        %1929 = vmatprep.subr.mxu0 0.0
        %v1930 = vand.u32 %v392, 4294901760
        %v1931 = vsub.f32 %v392, %v1930
        %v1932 = vand.u32 %v1931, 4294901760
        %1933 = vmatpush1.xpose.msra.mxu0 %v1932
        %1934 = vmatprep.subr.mxu0 0.0
        %v1935 = vand.u32 %v395, 4294901760
        %v1936 = vsub.f32 %v395, %v1935
        %v1937 = vand.u32 %v1936, 4294901760
        %1938 = vmatpush1.xpose.msra.mxu0 %v1937
        %1939 = vmatprep.subr.mxu0 0.0
        %v1940 = vand.u32 %v398, 4294901760
        %v1941 = vsub.f32 %v398, %v1940
        %v1942 = vand.u32 %v1941, 4294901760
        %1943 = vmatpush1.xpose.msra.mxu0 %v1942
        %1944 = vmatprep.subr.mxu0 0.0
        %v1945 = vand.u32 %v401, 4294901760
        %v1946 = vsub.f32 %v401, %v1945
        %v1947 = vand.u32 %v1946, 4294901760
        %1948 = vmatpush1.xpose.msra.mxu0 %v1947
        %1949 = vmatprep.subr.mxu0 0.0
        %v1950 = vand.u32 %v404, 4294901760
        %v1951 = vsub.f32 %v404, %v1950
        %v1952 = vand.u32 %v1951, 4294901760
        %1953 = vmatpush1.xpose.msra.mxu0 %v1952
        %1954 = vmatprep.subr.mxu0 0.0
        %v1955 = vand.u32 %v407, 4294901760
        %v1956 = vsub.f32 %v407, %v1955
        %v1957 = vand.u32 %v1956, 4294901760
        %1958 = vmatpush1.xpose.msra.mxu0 %v1957
        %1959 = vmatprep.subr.mxu0 0.0
        %v1960 = vand.u32 %v410, 4294901760
        %v1961 = vsub.f32 %v410, %v1960
        %v1962 = vand.u32 %v1961, 4294901760
        %1963 = vmatpush1.xpose.msra.mxu0 %v1962
        %1964 = vmatprep.subr.mxu0 0.0
        %v1965 = vand.u32 %v413, 4294901760
        %v1966 = vsub.f32 %v413, %v1965
        %v1967 = vand.u32 %v1966, 4294901760
        %1968 = vmatpush1.xpose.msra.mxu0 %v1967
        %1969 = vmatprep.subr.mxu0 0.0
        %v1970 = vand.u32 %v416, 4294901760
        %v1971 = vsub.f32 %v416, %v1970
        %v1972 = vand.u32 %v1971, 4294901760
        %1973 = vmatpush1.xpose.msra.mxu0 %v1972
        %1974 = vmatprep.subr.mxu0 0.0
        %v1975 = vand.u32 %v419, 4294901760
        %v1976 = vsub.f32 %v419, %v1975
        %v1977 = vand.u32 %v1976, 4294901760
        %1978 = vmatpush1.xpose.msra.mxu0 %v1977
        %1979 = vmatprep.subr.mxu0 0.0
        %v1980 = vand.u32 %v422, 4294901760
        %v1981 = vsub.f32 %v422, %v1980
        %v1982 = vand.u32 %v1981, 4294901760
        %1983 = vmatpush1.xpose.msra.mxu0 %v1982
        %1984 = vmatprep.subr.mxu0 0.0
        %v1985 = vand.u32 %v425, 4294901760
        %v1986 = vsub.f32 %v425, %v1985
        %v1987 = vand.u32 %v1986, 4294901760
        %1988 = vmatpush1.xpose.msra.mxu0 %v1987
        %1989 = vmatprep.subr.mxu0 0.0
        %v1990 = vand.u32 %v428, 4294901760
        %v1991 = vsub.f32 %v428, %v1990
        %v1992 = vand.u32 %v1991, 4294901760
        %1993 = vmatpush1.xpose.msra.mxu0 %v1992
        %1994 = vmatprep.subr.mxu0 0.0
        %v1995 = vand.u32 %v431, 4294901760
        %v1996 = vsub.f32 %v431, %v1995
        %v1997 = vand.u32 %v1996, 4294901760
        %1998 = vmatpush1.xpose.msra.mxu0 %v1997
        %1999 = vmatprep.subr.mxu0 0.0
        %v2000 = vand.u32 %v434, 4294901760
        %v2001 = vsub.f32 %v434, %v2000
        %v2002 = vand.u32 %v2001, 4294901760
        %2003 = vmatpush1.xpose.msra.mxu0 %v2002
        %2004 = vmatprep.subr.mxu0 0.0
        %v2005 = vand.u32 %v437, 4294901760
        %v2006 = vsub.f32 %v437, %v2005
        %v2007 = vand.u32 %v2006, 4294901760
        %2008 = vmatpush1.xpose.msra.mxu0 %v2007
        %2009 = vmatprep.subr.mxu0 0.0
        %v2010 = vand.u32 %v440, 4294901760
        %v2011 = vsub.f32 %v440, %v2010
        %v2012 = vand.u32 %v2011, 4294901760
        %2013 = vmatpush1.xpose.msra.mxu0 %v2012
        %2014 = vmatprep.subr.mxu0 0.0
        %v2015 = vand.u32 %v443, 4294901760
        %v2016 = vsub.f32 %v443, %v2015
        %v2017 = vand.u32 %v2016, 4294901760
        %2018 = vmatpush1.xpose.msra.mxu0 %v2017
        %2019 = vmatprep.subr.mxu0 0.0
        %v2020 = vand.u32 %v446, 4294901760
        %v2021 = vsub.f32 %v446, %v2020
        %v2022 = vand.u32 %v2021, 4294901760
        %2023 = vmatpush1.xpose.msra.mxu0 %v2022
        %2024 = vmatprep.subr.mxu0 0.0
        %v2025 = vand.u32 %v449, 4294901760
        %v2026 = vsub.f32 %v449, %v2025
        %v2027 = vand.u32 %v2026, 4294901760
        %2028 = vmatpush1.xpose.msra.mxu0 %v2027
        %2029 = vmatprep.subr.mxu0 0.0
        %v2030 = vand.u32 %v452, 4294901760
        %v2031 = vsub.f32 %v452, %v2030
        %v2032 = vand.u32 %v2031, 4294901760
        %2033 = vmatpush1.xpose.msra.mxu0 %v2032
        %2034 = vmatprep.subr.mxu0 0.0
        %v2035 = vand.u32 %v455, 4294901760
        %v2036 = vsub.f32 %v455, %v2035
        %v2037 = vand.u32 %v2036, 4294901760
        %2038 = vmatpush1.xpose.msra.mxu0 %v2037
        %2039 = vmatprep.subr.mxu0 0.0
        %v2040 = vand.u32 %v458, 4294901760
        %v2041 = vsub.f32 %v458, %v2040
        %v2042 = vand.u32 %v2041, 4294901760
        %2043 = vmatpush1.xpose.msra.mxu0 %v2042
        %2044 = vmatprep.subr.mxu0 0.0
        %v2045 = vand.u32 %v461, 4294901760
        %v2046 = vsub.f32 %v461, %v2045
        %v2047 = vand.u32 %v2046, 4294901760
        %2048 = vmatpush1.xpose.msra.mxu0 %v2047
        %2049 = vmatprep.subr.mxu0 0.0
        %v2050 = vand.u32 %v464, 4294901760
        %v2051 = vsub.f32 %v464, %v2050
        %v2052 = vand.u32 %v2051, 4294901760
        %2053 = vmatpush1.xpose.msra.mxu0 %v2052
        %2054 = vmatprep.subr.mxu0 0.0
        %v2055 = vand.u32 %v467, 4294901760
        %v2056 = vsub.f32 %v467, %v2055
        %v2057 = vand.u32 %v2056, 4294901760
        %2058 = vmatpush1.xpose.msra.mxu0 %v2057
        %2059 = vmatprep.subr.mxu0 0.0
        %v2060 = vand.u32 %v470, 4294901760
        %v2061 = vsub.f32 %v470, %v2060
        %v2062 = vand.u32 %v2061, 4294901760
        %2063 = vmatpush1.xpose.msra.mxu0 %v2062
        %2064 = vmatprep.subr.mxu0 0.0
        %v2065 = vand.u32 %v473, 4294901760
        %v2066 = vsub.f32 %v473, %v2065
        %v2067 = vand.u32 %v2066, 4294901760
        %2068 = vmatpush1.xpose.msra.mxu0 %v2067
        %2069 = vmatprep.subr.mxu0 0.0
        %v2070 = vand.u32 %v476, 4294901760
        %v2071 = vsub.f32 %v476, %v2070
        %v2072 = vand.u32 %v2071, 4294901760
        %2073 = vmatpush1.xpose.msra.mxu0 %v2072
        %2074 = vmatprep.subr.mxu0 0.0
        %v2075 = vand.u32 %v479, 4294901760
        %v2076 = vsub.f32 %v479, %v2075
        %v2077 = vand.u32 %v2076, 4294901760
        %2078 = vmatpush1.xpose.msra.mxu0 %v2077
        %2079 = vmatprep.mubr.f32.mxu0 0.0
        %v2080 = vand.u32 %v287, 4294901760
        %2081 = vmatmul.mubr.f32.gmra.mrb[0].mxu0 %v2080
        %v2082 = vpop.f32.mrb[0].mxu0
        %v2083 = vadd.f32 %v1915, %v2082
        %v2084 = vpop.f32.mrb[0].mxu0
        %v2085 = vadd.f32 %v1917, %v2084
        %2086 = vdwg.mxu0
        %2087 = vmatprep.subr.mxu0 0.0
        %v2088 = vand.u32 %v386, 4294901760
        %2089 = vmatpush1.xpose.msra.mxu0 %v2088
        %2090 = vmatprep.subr.mxu0 0.0
        %v2091 = vand.u32 %v389, 4294901760
        %2092 = vmatpush1.xpose.msra.mxu0 %v2091
        %2093 = vmatprep.subr.mxu0 0.0
        %v2094 = vand.u32 %v392, 4294901760
        %2095 = vmatpush1.xpose.msra.mxu0 %v2094
        %2096 = vmatprep.subr.mxu0 0.0
        %v2097 = vand.u32 %v395, 4294901760
        %2098 = vmatpush1.xpose.msra.mxu0 %v2097
        %2099 = vmatprep.subr.mxu0 0.0
        %v2100 = vand.u32 %v398, 4294901760
        %2101 = vmatpush1.xpose.msra.mxu0 %v2100
        %2102 = vmatprep.subr.mxu0 0.0
        %v2103 = vand.u32 %v401, 4294901760
        %2104 = vmatpush1.xpose.msra.mxu0 %v2103
        %2105 = vmatprep.subr.mxu0 0.0
        %v2106 = vand.u32 %v404, 4294901760
        %2107 = vmatpush1.xpose.msra.mxu0 %v2106
        %2108 = vmatprep.subr.mxu0 0.0
        %v2109 = vand.u32 %v407, 4294901760
        %2110 = vmatpush1.xpose.msra.mxu0 %v2109
        %2111 = vmatprep.subr.mxu0 0.0
        %v2112 = vand.u32 %v410, 4294901760
        %2113 = vmatpush1.xpose.msra.mxu0 %v2112
        %2114 = vmatprep.subr.mxu0 0.0
        %v2115 = vand.u32 %v413, 4294901760
        %2116 = vmatpush1.xpose.msra.mxu0 %v2115
        %2117 = vmatprep.subr.mxu0 0.0
        %v2118 = vand.u32 %v416, 4294901760
        %2119 = vmatpush1.xpose.msra.mxu0 %v2118
        %2120 = vmatprep.subr.mxu0 0.0
        %v2121 = vand.u32 %v419, 4294901760
        %2122 = vmatpush1.xpose.msra.mxu0 %v2121
        %2123 = vmatprep.subr.mxu0 0.0
        %v2124 = vand.u32 %v422, 4294901760
        %2125 = vmatpush1.xpose.msra.mxu0 %v2124
        %2126 = vmatprep.subr.mxu0 0.0
        %v2127 = vand.u32 %v425, 4294901760
        %2128 = vmatpush1.xpose.msra.mxu0 %v2127
        %2129 = vmatprep.subr.mxu0 0.0
        %v2130 = vand.u32 %v428, 4294901760
        %2131 = vmatpush1.xpose.msra.mxu0 %v2130
        %2132 = vmatprep.subr.mxu0 0.0
        %v2133 = vand.u32 %v431, 4294901760
        %2134 = vmatpush1.xpose.msra.mxu0 %v2133
        %2135 = vmatprep.subr.mxu0 0.0
        %v2136 = vand.u32 %v434, 4294901760
        %2137 = vmatpush1.xpose.msra.mxu0 %v2136
        %2138 = vmatprep.subr.mxu0 0.0
        %v2139 = vand.u32 %v437, 4294901760
        %2140 = vmatpush1.xpose.msra.mxu0 %v2139
        %2141 = vmatprep.subr.mxu0 0.0
        %v2142 = vand.u32 %v440, 4294901760
        %2143 = vmatpush1.xpose.msra.mxu0 %v2142
        %2144 = vmatprep.subr.mxu0 0.0
        %v2145 = vand.u32 %v443, 4294901760
        %2146 = vmatpush1.xpose.msra.mxu0 %v2145
        %2147 = vmatprep.subr.mxu0 0.0
        %v2148 = vand.u32 %v446, 4294901760
        %2149 = vmatpush1.xpose.msra.mxu0 %v2148
        %2150 = vmatprep.subr.mxu0 0.0
        %v2151 = vand.u32 %v449, 4294901760
        %2152 = vmatpush1.xpose.msra.mxu0 %v2151
        %2153 = vmatprep.subr.mxu0 0.0
        %v2154 = vand.u32 %v452, 4294901760
        %2155 = vmatpush1.xpose.msra.mxu0 %v2154
        %2156 = vmatprep.subr.mxu0 0.0
        %v2157 = vand.u32 %v455, 4294901760
        %2158 = vmatpush1.xpose.msra.mxu0 %v2157
        %2159 = vmatprep.subr.mxu0 0.0
        %v2160 = vand.u32 %v458, 4294901760
        %2161 = vmatpush1.xpose.msra.mxu0 %v2160
        %2162 = vmatprep.subr.mxu0 0.0
        %v2163 = vand.u32 %v461, 4294901760
        %2164 = vmatpush1.xpose.msra.mxu0 %v2163
        %2165 = vmatprep.subr.mxu0 0.0
        %v2166 = vand.u32 %v464, 4294901760
        %2167 = vmatpush1.xpose.msra.mxu0 %v2166
        %2168 = vmatprep.subr.mxu0 0.0
        %v2169 = vand.u32 %v467, 4294901760
        %2170 = vmatpush1.xpose.msra.mxu0 %v2169
        %2171 = vmatprep.subr.mxu0 0.0
        %v2172 = vand.u32 %v470, 4294901760
        %2173 = vmatpush1.xpose.msra.mxu0 %v2172
        %2174 = vmatprep.subr.mxu0 0.0
        %v2175 = vand.u32 %v473, 4294901760
        %2176 = vmatpush1.xpose.msra.mxu0 %v2175
        %2177 = vmatprep.subr.mxu0 0.0
        %v2178 = vand.u32 %v476, 4294901760
        %2179 = vmatpush1.xpose.msra.mxu0 %v2178
        %2180 = vmatprep.subr.mxu0 0.0
        %v2181 = vand.u32 %v479, 4294901760
        %2182 = vmatpush1.xpose.msra.mxu0 %v2181
        %2183 = vmatprep.mubr.f32.mxu0 0.0
        %v2184 = vand.u32 %v287, 4294901760
        %2185 = vmatmul.mubr.f32.gmra.mrb[0].mxu0 %v2184
        %v2186 = vpop.f32.mrb[0].mxu0
        %v2187 = vadd.f32 %v2083, %v2186
        %v2188 = vpop.f32.mrb[0].mxu0
        %v2189 = vadd.f32 %v2085, %v2188
        %2190 = vdwg.mxu0
        %v2195 = vcombine.low %v1332, %v1334
        %v2196 = vcombine.low %v2187, %v2189
        %v2198 = vunpack.c.l.s4 1966171168
        %v2199 = vunpack.c.0.s8 %v2198
        %v2200 = vlaneseq
        %v2201 = vshrl.u32 %v2200, 7
        %v2202 = vsub.s32 %v2199, %v2201
        %v2203 = vrot.slane %v2195, %v2202
        %v2205 = vunpack.c.l.s4 1966171168
        %v2206 = vunpack.c.0.s8 %v2205
        %v2207 = vlaneseq
        %v2208 = vshrl.u32 %v2207, 7
        %v2209 = vsub.s32 %v2206, %v2208
        %v2210 = vrot.slane %v2196, %v2209
        %v2211 = vcombine.low %v2203, %v2210
        %v2213 = vunpack.c.l.s4 1966171168
        %v2214 = vunpack.c.0.s8 %v2213
        %v2215 = vlaneseq
        %v2216 = vshrl.u32 %v2215, 7
        %v2217 = vsub.s32 %v2214, %v2216
        %v2218 = vrot.slane %v2211, %v2217
        %v2220 = vadd.f32 %v284, %v2218
        %v2221 = vlaneseq
        %vm2222 = vcmp.ge.s32.totalorder %v2221, 0
        %vm2223 = vcmp.lt.s32.totalorder %v2221, 512
        %vm2224 = vmand %vm2222, %vm2223
        %2225 = vst.msk [vmem:[#allocation2] sm:$0xf] %vm2224, %v2220
        // Predicated region
        $region37: #{tpu_custom_call.1} parent=31 // pred_check
          %p2226 = pneg %p210
        $region38: #{tpu_custom_call.1} parent=31 // pred_check_branch
          %2228 = sbr.rel (%p2226) target = $region40
        $region39: #{tpu_custom_call.1} parent=31 // pred_region
          %v2229 = vld [vmem:[#allocation2] sm:$0xf]
          %s2230 = sld [smem:[#allocation3]]
          %v2231 = vstv %s2230
          %v2232 = vadd.f32 %v2229, %v2231
          %v2233 = vxor.u32 %v2232, 2147483648
          %v2234 = vmul.f32 %v2233, 1.442695
          %v2235 = vpow.pop %v2234
          %v2236 = vadd.f32 %v2235, 1.0
          %v2237 = vrcp.pop %v2236
          %v2238 = vmul.f32 1.0, %v2237
          %2239 = vst.msk [vmem:[%s196] sm:$0xf] %vm2224, %v2238
        $region40: #{tpu_custom_call.1} parent=31 // pred_fallthru
          _
        %s2240 = sand.u32 %s113, 1
        %s2241 = scalar_lea.sflag [#allocation5], %s2240
        %s2242 = sand.u32 %s113, 1
        %s2243 = smul.addr %s2242, 4
        %s2244 = scalar_lea.vmem [#allocation4], %s2243
        // Predicated region
        $region41: #{tpu_custom_call.1} parent=31 // pred_check
          %p2245 = pneg %p123
        $region42: #{tpu_custom_call.1} parent=31 // pred_check_branch
          %2247 = sbr.rel (%p2245) target = $region44
        $region43: #{tpu_custom_call.1} parent=31 // pred_region
          %s2248 = smul.u32 4, %s22
          %s2250 = ssub.s32 64, 64
          %2251 = vsyncadd %s2241, %s2250
          %s2252 = smul.addr %s2248, 16
          %s2253 = scalar_lea.hbm %s3, %s2252
          %s2255 = sshll.u32 %s2244, 4
          %s2256 = int_to_ptr.vmem [resolvable:$true] %s2255
          %2258 = dma.vmem_to_hbm [thread:$0]  %s2256, 64, %s2253, %s2241
        $region44: #{tpu_custom_call.1} parent=31 // pred_fallthru
          _
      $region32: #{tpu_custom_call.1} parent=5 // pred_fallthru
        _
      %p2259 = scmp.le.s32.totalorder 2, %s13
      // Predicated region
      $region45: #{tpu_custom_call.1} parent=5 // pred_check
        %p2260 = pneg %p2259
      $region46: #{tpu_custom_call.1} parent=5 // pred_check_branch
        %2262 = sbr.rel (%p2260) target = $region48
      $region47: #{tpu_custom_call.1} parent=5 // pred_region
        %s2263 = ssub.s32 %s13, 2
        // Predicated region
        $region49: #{tpu_custom_call.1} parent=47 // pred_check
          %p2264 = pneg %p129
        $region50: #{tpu_custom_call.1} parent=47 // pred_check_branch
          %2266 = sbr.rel (%p2264) target = $region52
        $region51: #{tpu_custom_call.1} parent=47 // pred_region
          %s2267 = sand.u32 %s114, 1
          %s2268 = scalar_lea.sflag [#allocation5], %s2267
          %s2269 = sand.u32 %s114, 1
          %s2270 = smul.addr %s2269, 4
          %s2271 = scalar_lea.vmem [#allocation4], %s2270
          %2272 = dma.done %s2268, 64
        $region52: #{tpu_custom_call.1} parent=47 // pred_fallthru
          _
      $region48: #{tpu_custom_call.1} parent=5 // pred_fallthru
        _
    $region6: #{tpu_custom_call.1} parent=1 // loop_footer
      %s17 = sadd.s32 1, %s13
    $region7: #{tpu_custom_call.1} parent=1 // loop_footer_branch
      %12 = sbr.rel target = $region3
    $region8: #{tpu_custom_call.1} parent=1 // loop_exit
      _
    %2273 = vsyncpa [#allocation5], 1
    %s2274 = scalar_lea.sflag [#allocation5], 1
    %2275 = vsyncpa %s2274, 1

</llo_original>
